<compile_context>
chip_gen: v7x
topology: tpu7x:2x2x1
jax: 0.10.0
libtpu: 0.0.40
codegen_flags: <defaults>
</compile_context>

<pallas_src>
import functools

import numpy as np
import jax
import jax.numpy as jnp
from jax import lax
from jax.experimental import pallas as pl
from jax.experimental.pallas import tpu as pltpu


N_PAD = 128  # lane-dense padded width of the fused head-2 output


# ---------------------------------------------------------------------------
# Shape helpers
# ---------------------------------------------------------------------------
def _conv_out(s, k, st):
    return (s - k) // st + 1


def _conv_shapes(input_shape):
    C, H, W = input_shape
    OH1, OW1 = _conv_out(H, 8, 4), _conv_out(W, 8, 4)
    OH2, OW2 = _conv_out(OH1, 4, 2), _conv_out(OW1, 4, 2)
    OH3, OW3 = _conv_out(OH2, 2, 1), _conv_out(OW2, 2, 1)
    assert min(OH1, OW1, OH2, OW2, OH3, OW3) >= 1, "input spatial size too small"
    return (OH1, OW1), (OH2, OW2), (OH3, OW3)


# ---------------------------------------------------------------------------
# The fused forward kernel
# ---------------------------------------------------------------------------
def _make_fused_kernel(B, BH, BW, OH2, OW2, OH3, OW3):
    f32, bf16 = jnp.float32, jnp.bfloat16
    Mb = B * BH * BW          # space-to-depth rows per conv1 phase
    S3 = OH3 * OW3            # conv3 spatial positions per sample

    def kernel(p1_ref, w1_ref, b1_ref, w2_ref, b2_ref, w3_ref, b3_ref,
               wh1_ref, bh1_ref, wh2_ref, bh2_ref, out_ref,
               h1_scr, p2_scr, h2_scr, p3_scr, h3_scr):
        # ---- conv1 (8x8 stride 4) + ReLU: ONE big MXU dot, f32 accumulation.
        # p1 rows ordered (phase=(p,q), b, bh, bw); cols (kh, kw, c); /256 in w1.
        acc1 = jnp.dot(p1_ref[...], w1_ref[...], preferred_element_type=f32)
        h1 = jnp.maximum(acc1 + b1_ref[...], 0.0).astype(bf16)   # single cast
        # Store in space-to-depth layout: rows (b, bh, bw), 128 lanes (phase, c),
        # where conv1 output (oh1, ow1) = (2*bh + p, 2*bw + q).
        for ph in range(4):
            h1_scr[:, ph * 32:(ph + 1) * 32] = h1[ph * Mb:(ph + 1) * Mb, :]

        # ---- conv2 (4x4 stride 2) + ReLU via in-kernel im2col + ONE K=512 dot.
        # In s2d coords, the stride-2 4x4 window is a stride-1 2x2 window over
        # 128-channel blocks -> all gathers are contiguous 128-lane row copies.
        for a in range(2):
            for bb in range(2):
                col0 = (a * 2 + bb) * 128
                for bi in range(B):
                    for oh2 in range(OH2):
                        src0 = (bi * BH + oh2 + a) * BW + bb
                        dst0 = (bi * OH2 + oh2) * OW2
                        p2_scr[dst0:dst0 + OW2, col0:col0 + 128] = (
                            h1_scr[src0:src0 + OW2, :])
        acc2 = jnp.dot(p2_scr[...], w2_ref[...], preferred_element_type=f32)
        h2_scr[...] = jnp.maximum(acc2 + b2_ref[...], 0.0).astype(bf16)  # 1 cast

        # ---- conv3 (2x2 stride 1) + ReLU via im2col + ONE K=256 dot.
        for di in range(2):
            for dj in range(2):
                col0 = (di * 2 + dj) * 64
                for bi in range(B):
                    for oh3 in range(OH3):
                        src0 = (bi * OH2 + oh3 + di) * OW2 + dj
                        dst0 = (bi * OH3 + oh3) * OW3
                        p3_scr[dst0:dst0 + OW3, col0:col0 + 64] = (
                            h2_scr[src0:src0 + OW3, :])
        acc3 = jnp.dot(p3_scr[...], w3_ref[...], preferred_element_type=f32)
        h3_scr[...] = jnp.maximum(acc3 + b3_ref[...], 0.0).astype(bf16)  # 1 cast

        # ---- fused policy/value heads: accumulate (wp1||wv1) over the S3
        # spatial positions (avoids a lane-relayout reshape of conv_out).
        hacc = jnp.zeros((B, 1024), f32)
        for s in range(S3):
            if S3 == 1:
                rows = h3_scr[...]                        # (B, 128)
            else:
                rows = h3_scr[pl.ds(s, B, S3), :]         # batch rows of pos s
            hacc = hacc + jnp.dot(rows, wh1_ref[s * 128:(s + 1) * 128, :],
                                  preferred_element_type=f32)
        h = jnp.maximum(hacc + bh1_ref[...], 0.0).astype(bf16)           # 1 cast
        # Block-diagonal second layer, padded to 128 lanes (lane-dense store).
        out_ref[...] = (jnp.dot(h, wh2_ref[...], preferred_element_type=f32)
                        + bh2_ref[...])

    return kernel


# ---------------------------------------------------------------------------
# Boundary glue: conv1 im2col (bf16, single fused slice+concat, no transpose)
# ---------------------------------------------------------------------------
def _conv1_patches_s2d(x_nhwc, BH, BW):
    """Conv1 im2col.  Rows ordered (phase=(p,q), b, bh, bw); cols (kh, kw, c).

    Only the conv1 outputs consumed by conv2 (oh1 = 2*bh + p, bh < BH) are
    produced.  This is one fused XLA gather producing a small bf16 matrix.
    """
    B, H, W, C = x_nhwc.shape
    groups = []
    for p in range(2):
        for q in range(2):
            cols = []
            for kh in range(8):
                for kw in range(8):
                    r0, c0 = 4 * p + kh, 4 * q + kw
                    cols.append(x_nhwc[:, r0:r0 + 8 * (BH - 1) + 1:8,
                                       c0:c0 + 8 * (BW - 1) + 1:8, :])
            g = jnp.concatenate(cols, axis=-1)            # (B, BH, BW, 64*C)
            groups.append(g.reshape(B * BH * BW, 64 * C))
    return jnp.concatenate(groups, axis=0)                # (4*B*BH*BW, 64*C)


# ---------------------------------------------------------------------------
# Parameters: PyTorch-layout init + one-time conversion to kernel layout
# ---------------------------------------------------------------------------
def init_params(key, input_shape, n_actions):
    C, _, _ = input_shape
    (_, _), (_, _), (OH3, OW3) = _conv_shapes(input_shape)
    conv_out_size = 128 * OH3 * OW3
    ks = jax.random.split(key, 14)

    def u(k, shape, fan_in):
        bound = 1.0 / float(fan_in) ** 0.5
        return jax.random.uniform(k, shape, jnp.float32, -bound, bound)

    p = {}
    p["w1"] = u(ks[0], (32, C, 8, 8), C * 64)
    p["b1"] = u(ks[1], (32,), C * 64)
    p["w2"] = u(ks[2], (64, 32, 4, 4), 32 * 16)
    p["b2"] = u(ks[3], (64,), 32 * 16)
    p["w3"] = u(ks[4], (128, 64, 2, 2), 64 * 4)
    p["b3"] = u(ks[5], (128,), 64 * 4)
    p["wp1"] = u(ks[6], (512, conv_out_size), conv_out_size)
    p["bp1"] = u(ks[7], (512,), conv_out_size)
    p["wp2"] = u(ks[8], (n_actions, 512), 512)
    p["bp2"] = u(ks[9], (n_actions,), 512)
    p["wv1"] = u(ks[10], (512, conv_out_size), conv_out_size)
    p["bv1"] = u(ks[11], (512,), conv_out_size)
    p["wv2"] = u(ks[12], (1, 512), 512)
    p["bv2"] = u(ks[13], (1,), 512)
    return p


def prepare_kernel_params(params, input_shape, n_actions):
    """One-time conversion from PyTorch-layout params to the fused-kernel layout."""
    C, _, _ = input_shape
    (_, _), (_, _), (OH3, OW3) = _conv_shapes(input_shape)
    S3 = OH3 * OW3
    conv_out_size = 128 * S3
    f32, bf16 = jnp.float32, jnp.bfloat16
    assert n_actions + 1 <= N_PAD

    kp = {}
    # conv1: (OC, IC, kh, kw) -> rows (kh, kw, ic), cols OC; /256 folded in.
    kp["w1"] = (params["w1"].transpose(2, 3, 1, 0).reshape(8 * 8 * C, 32)
                / 256.0).astype(bf16)
    kp["b1"] = params["b1"].reshape(1, 32).astype(f32)

    # conv2: rows permuted to the kernel's space-to-depth im2col column order
    # (a, bb, p, q, ic) with (kh, kw) = (2a+p, 2bb+q)  [matches kernel loops].
    w2_rows = params["w2"].transpose(2, 3, 1, 0).reshape(4 * 4 * 32, 64)
    perm = []
    for a in range(2):
        for bb in range(2):
            for p in range(2):
                for q in range(2):
                    kh, kw = 2 * a + p, 2 * bb + q
                    base = (kh * 4 + kw) * 32
                    perm.extend(range(base, base + 32))
    kp["w2"] = w2_rows[np.array(perm)].astype(bf16)                  # (512, 64)
    kp["b2"] = params["b2"].reshape(1, 64).astype(f32)

    # conv3: rows (kh, kw, ic) match the kernel's (di, dj, ic) column order.
    kp["w3"] = params["w3"].transpose(2, 3, 1, 0).reshape(2 * 2 * 64, 128).astype(bf16)
    kp["b3"] = params["b3"].reshape(1, 128).astype(f32)

    # Head layer 1: concat policy/value into one (conv_out, 1024) matmul.
    # Kernel conv_out index = (oh3*OW3+ow3)*128 + c; PyTorch .view(B,-1) is
    # (c, oh3, ow3): permute weight rows to match.
    r = np.arange(conv_out_size)
    torch_idx = (r % 128) * S3 + (r // 128)
    wp1 = params["wp1"].T[torch_idx]
    wv1 = params["wv1"].T[torch_idx]
    kp["wh1"] = jnp.concatenate([wp1, wv1], axis=1).astype(bf16)     # (co, 1024)
    kp["bh1"] = jnp.concatenate([params["bp1"], params["bv1"]]).reshape(1, 1024).astype(f32)

    # Head layer 2: block-diagonal, padded to N_PAD lanes -> [policy|value|0...].
    wh2 = jnp.zeros((1024, N_PAD), f32)
    wh2 = wh2.at[:512, :n_actions].set(params["wp2"].T)
    wh2 = wh2.at[512:, n_actions:n_actions + 1].set(params["wv2"].T)
    kp["wh2"] = wh2.astype(bf16)
    bh2 = jnp.zeros((1, N_PAD), f32)
    bh2 = bh2.at[0, :n_actions].set(params["bp2"])
    bh2 = bh2.at[0, n_actions].set(params["bv2"][0])
    kp["bh2"] = bh2
    return kp


# ---------------------------------------------------------------------------
# Forward pass (matches AtariA2C.forward semantics)
# ---------------------------------------------------------------------------
def atari_a2c_forward(kparams, x_uint8_nchw, *, input_shape, n_actions):
    C, H, W = input_shape
    (_, _), (OH2, OW2), (OH3, OW3) = _conv_shapes(input_shape)
    BH, BW = OH2 + 1, OW2 + 1          # space-to-depth block grid for h1
    B = x_uint8_nchw.shape[0]
    S3 = OH3 * OW3

    # Boundary glue: uint8 NCHW -> bf16 NHWC -> conv1 im2col (exact for 0..255;
    # the /256 scale lives in w1).
    x = x_uint8_nchw.astype(jnp.bfloat16).transpose(0, 2, 3, 1)
    patches = _conv1_patches_s2d(x, BH, BW)              # (4*B*BH*BW, 64*C) bf16

    kernel = _make_fused_kernel(B, BH, BW, OH2, OW2, OH3, OW3)
    args = (patches, kparams["w1"], kparams["b1"], kparams["w2"], kparams["b2"],
            kparams["w3"], kparams["b3"], kparams["wh1"], kparams["bh1"],
            kparams["wh2"], kparams["bh2"])

    Mb = B * BH * BW
    M2 = B * OH2 * OW2
    M3 = B * S3
    flops = 2 * (4 * Mb * (64 * C) * 32        # conv1
                 + M2 * 512 * 64               # conv2
                 + M3 * 256 * 128              # conv3
                 + B * (128 * S3) * 1024       # head layer 1 (both heads)
                 + B * 1024 * N_PAD)           # head layer 2 (padded)
    bytes_accessed = int(sum(int(np.prod(a.shape)) * a.dtype.itemsize for a in args)
                         + B * N_PAD * 4)

    out = pl.pallas_call(
        kernel,
        out_shape=jax.ShapeDtypeStruct((B, N_PAD), jnp.float32),
        in_specs=[pl.BlockSpec(memory_space=pltpu.MemorySpace.VMEM) for _ in args],
        out_specs=pl.BlockSpec(memory_space=pltpu.MemorySpace.VMEM),
        scratch_shapes=[
            pltpu.VMEM((Mb, 128), jnp.bfloat16),    # h1 (space-to-depth)
            pltpu.VMEM((M2, 512), jnp.bfloat16),    # conv2 im2col
            pltpu.VMEM((M2, 64), jnp.bfloat16),     # h2
            pltpu.VMEM((M3, 256), jnp.bfloat16),    # conv3 im2col
            pltpu.VMEM((M3, 128), jnp.bfloat16),    # h3
        ],
        compiler_params=pltpu.CompilerParams(vmem_limit_bytes=32 * 1024 * 1024),
        cost_estimate=pl.CostEstimate(flops=int(flops), transcendentals=0,
                                      bytes_accessed=bytes_accessed),
    )(*args)
    return out[:, :n_actions], out[:, n_actions:n_actions + 1]


# ---------------------------------------------------------------------------
# Pure-JAX f32 reference (independent of the kernel's layout plumbing)
# ---------------------------------------------------------------------------
def reference_forward(params, x_uint8_nchw):
    x = x_uint8_nchw.astype(jnp.float32) / 256.0

    def conv(h, w, b, stride):
        out = lax.conv(h, w, (stride, stride), "VALID")        # NCHW / OIHW
        return jnp.maximum(out + b.reshape(1, -1, 1, 1), 0.0)

    h = conv(x, params["w1"], params["b1"], 4)
    h = conv(h, params["w2"], params["b2"], 2)
    h = conv(h, params["w3"], params["b3"], 1)
    conv_out = h.reshape(h.shape[0], -1)
    hp = jnp.maximum(conv_out @ params["wp1"].T + params["bp1"], 0.0)
    policy = hp @ params["wp2"].T + params["bp2"]
    hv = jnp.maximum(conv_out @ params["wv1"].T + params["bv1"], 0.0)
    value = hv @ params["wv2"].T + params["bv2"]
    return policy, value


if __name__ == "__main__":
    key = jax.random.PRNGKey(0)
    input_shape = (4, 32, 32)   # (C, H, W): smallest Atari-like size the conv stack supports
    n_actions = 6
    batch = 2

    pkey, xkey = jax.random.split(key)
    params = init_params(pkey, input_shape, n_actions)
    kparams = prepare_kernel_params(params, input_shape, n_actions)
    x = jax.random.randint(xkey, (batch,) + input_shape, 0, 256,
                           dtype=jnp.int32).astype(jnp.uint8)

    fwd = jax.jit(functools.partial(atari_a2c_forward,
                                    input_shape=input_shape, n_actions=n_actions))
    policy, value = fwd(kparams, x)
    jax.block_until_ready((policy, value))

    assert policy.shape == (batch, n_actions) and policy.dtype == jnp.float32
    assert value.shape == (batch, 1) and value.dtype == jnp.float32
    assert bool(jnp.all(jnp.isfinite(policy))) and bool(jnp.all(jnp.isfinite(value)))

    # Tolerance check vs the f32 reference (bf16 matmuls => ~1e-3 abs error here).
    ref_policy, ref_value = reference_forward(params, x)
    err = max(float(jnp.max(jnp.abs(policy - ref_policy))),
              float(jnp.max(jnp.abs(value - ref_value))))
    assert err < 2e-2, f"mismatch vs reference: max abs err {err}"

    print("KERNEL_OK")
</pallas_src>

<mosaic_0001>
module attributes {stable_mosaic.version = 11 : i64} {
  func.func @kernel(%arg0: memref<72x256xbf16, #tpu.memory_space<vmem>>, %arg1: memref<256x32xbf16, #tpu.memory_space<vmem>>, %arg2: memref<1x32xf32, #tpu.memory_space<vmem>>, %arg3: memref<512x64xbf16, #tpu.memory_space<vmem>>, %arg4: memref<1x64xf32, #tpu.memory_space<vmem>>, %arg5: memref<256x128xbf16, #tpu.memory_space<vmem>>, %arg6: memref<1x128xf32, #tpu.memory_space<vmem>>, %arg7: memref<128x1024xbf16, #tpu.memory_space<vmem>>, %arg8: memref<1x1024xf32, #tpu.memory_space<vmem>>, %arg9: memref<1024x128xbf16, #tpu.memory_space<vmem>>, %arg10: memref<1x128xf32, #tpu.memory_space<vmem>>, %arg11: memref<2x128xf32, #tpu.memory_space<vmem>>, %arg12: memref<18x128xbf16, #tpu.memory_space<vmem>>, %arg13: memref<8x512xbf16, #tpu.memory_space<vmem>>, %arg14: memref<8x64xbf16, #tpu.memory_space<vmem>>, %arg15: memref<2x256xbf16, #tpu.memory_space<vmem>>, %arg16: memref<2x128xbf16, #tpu.memory_space<vmem>>) attributes {dimension_semantics = [], scalar_prefetch = 0 : i64, scratch_operands = 5 : i64, tpu.core_type = #tpu.core_type<tc>} {
    %c0 = arith.constant 0 : index
    %c0_0 = arith.constant 0 : index
    %0 = vector.load %arg0[%c0, %c0_0] : memref<72x256xbf16, #tpu.memory_space<vmem>>, vector<72x256xbf16>
    %c0_1 = arith.constant 0 : index
    %c0_2 = arith.constant 0 : index
    %1 = vector.load %arg1[%c0_1, %c0_2] : memref<256x32xbf16, #tpu.memory_space<vmem>>, vector<256x32xbf16>
    %cst = arith.constant dense<0.000000e+00> : vector<72x32xf32>
    %2 = tpu.matmul %0, %1, %cst {dimension_numbers = #tpu.dot_dimension_numbers<[1], [0], [0], [1], [0, 0, 1, 1], [], []>} : vector<72x256xbf16>, vector<256x32xbf16>, vector<72x32xf32> -> vector<72x32xf32>
    %c0_3 = arith.constant 0 : index
    %c0_4 = arith.constant 0 : index
    %3 = vector.load %arg2[%c0_3, %c0_4] : memref<1x32xf32, #tpu.memory_space<vmem>>, vector<1x32xf32>
    %4 = vector.broadcast %3 : vector<1x32xf32> to vector<72x32xf32>
    %5 = arith.addf %2, %4 : vector<72x32xf32>
    %cst_5 = arith.constant 0.000000e+00 : f32
    %6 = vector.broadcast %cst_5 : f32 to vector<72x32xf32>
    %7 = arith.maximumf %5, %6 : vector<72x32xf32>
    %8 = arith.truncf %7 : vector<72x32xf32> to vector<72x32xbf16>
    %9 = vector.extract_strided_slice %8 {offsets = [0, 0], sizes = [18, 32], strides = [1, 1]} : vector<72x32xbf16> to vector<18x32xbf16>
    %c0_6 = arith.constant 0 : index
    %c0_7 = arith.constant 0 : index
    %10 = vector.load %arg12[%c0_6, %c0_7] : memref<18x128xbf16, #tpu.memory_space<vmem>>, vector<18x32xbf16>
    tpu.vector_store %arg12[%c0_6, %c0_7], %9 {strides = array<i32>} : memref<18x128xbf16, #tpu.memory_space<vmem>>, vector<18x32xbf16>,
    %11 = vector.extract_strided_slice %8 {offsets = [18, 0], sizes = [18, 32], strides = [1, 1]} : vector<72x32xbf16> to vector<18x32xbf16>
    %c0_8 = arith.constant 0 : index
    %c32 = arith.constant 32 : index
    %12 = vector.load %arg12[%c0_8, %c32] : memref<18x128xbf16, #tpu.memory_space<vmem>>, vector<18x32xbf16>
    tpu.vector_store %arg12[%c0_8, %c32], %11 {strides = array<i32>} : memref<18x128xbf16, #tpu.memory_space<vmem>>, vector<18x32xbf16>,
    %13 = vector.extract_strided_slice %8 {offsets = [36, 0], sizes = [18, 32], strides = [1, 1]} : vector<72x32xbf16> to vector<18x32xbf16>
    %c0_9 = arith.constant 0 : index
    %c64 = arith.constant 64 : index
    %14 = vector.load %arg12[%c0_9, %c64] : memref<18x128xbf16, #tpu.memory_space<vmem>>, vector<18x32xbf16>
    tpu.vector_store %arg12[%c0_9, %c64], %13 {strides = array<i32>} : memref<18x128xbf16, #tpu.memory_space<vmem>>, vector<18x32xbf16>,
    %15 = vector.extract_strided_slice %8 {offsets = [54, 0], sizes = [18, 32], strides = [1, 1]} : vector<72x32xbf16> to vector<18x32xbf16>
    %c0_10 = arith.constant 0 : index
    %c96 = arith.constant 96 : index
    %16 = vector.load %arg12[%c0_10, %c96] : memref<18x128xbf16, #tpu.memory_space<vmem>>, vector<18x32xbf16>
    tpu.vector_store %arg12[%c0_10, %c96], %15 {strides = array<i32>} : memref<18x128xbf16, #tpu.memory_space<vmem>>, vector<18x32xbf16>,
    %c0_11 = arith.constant 0 : index
    %c0_12 = arith.constant 0 : index
    %17 = vector.load %arg12[%c0_11, %c0_12] : memref<18x128xbf16, #tpu.memory_space<vmem>>, vector<2x128xbf16>
    %c0_13 = arith.constant 0 : index
    %c0_14 = arith.constant 0 : index
    %18 = vector.load %arg13[%c0_13, %c0_14] : memref<8x512xbf16, #tpu.memory_space<vmem>>, vector<2x128xbf16>
    tpu.vector_store %arg13[%c0_13, %c0_14], %17 {strides = array<i32>} : memref<8x512xbf16, #tpu.memory_space<vmem>>, vector<2x128xbf16>,
    %c3 = arith.constant 3 : index
    %c0_15 = arith.constant 0 : index
    %19 = vector.load %arg12[%c3, %c0_15] : memref<18x128xbf16, #tpu.memory_space<vmem>>, vector<2x128xbf16>
    %c2 = arith.constant 2 : index
    %c0_16 = arith.constant 0 : index
    %20 = vector.load %arg13[%c2, %c0_16] : memref<8x512xbf16, #tpu.memory_space<vmem>>, vector<2x128xbf16>
    tpu.vector_store %arg13[%c2, %c0_16], %19 {strides = array<i32>} : memref<8x512xbf16, #tpu.memory_space<vmem>>, vector<2x128xbf16>,
    %c9 = arith.constant 9 : index
    %c0_17 = arith.constant 0 : index
    %21 = vector.load %arg12[%c9, %c0_17] : memref<18x128xbf16, #tpu.memory_space<vmem>>, vector<2x128xbf16>
    %c4 = arith.constant 4 : index
    %c0_18 = arith.constant 0 : index
    %22 = vector.load %arg13[%c4, %c0_18] : memref<8x512xbf16, #tpu.memory_space<vmem>>, vector<2x128xbf16>
    tpu.vector_store %arg13[%c4, %c0_18], %21 {strides = array<i32>} : memref<8x512xbf16, #tpu.memory_space<vmem>>, vector<2x128xbf16>,
    %c12 = arith.constant 12 : index
    %c0_19 = arith.constant 0 : index
    %23 = vector.load %arg12[%c12, %c0_19] : memref<18x128xbf16, #tpu.memory_space<vmem>>, vector<2x128xbf16>
    %c6 = arith.constant 6 : index
    %c0_20 = arith.constant 0 : index
    %24 = vector.load %arg13[%c6, %c0_20] : memref<8x512xbf16, #tpu.memory_space<vmem>>, vector<2x128xbf16>
    tpu.vector_store %arg13[%c6, %c0_20], %23 {strides = array<i32>} : memref<8x512xbf16, #tpu.memory_space<vmem>>, vector<2x128xbf16>,
    %c1 = arith.constant 1 : index
    %c0_21 = arith.constant 0 : index
    %25 = vector.load %arg12[%c1, %c0_21] : memref<18x128xbf16, #tpu.memory_space<vmem>>, vector<2x128xbf16>
    %c0_22 = arith.constant 0 : index
    %c128 = arith.constant 128 : index
    %26 = vector.load %arg13[%c0_22, %c128] : memref<8x512xbf16, #tpu.memory_space<vmem>>, vector<2x128xbf16>
    tpu.vector_store %arg13[%c0_22, %c128], %25 {strides = array<i32>} : memref<8x512xbf16, #tpu.memory_space<vmem>>, vector<2x128xbf16>,
    %c4_23 = arith.constant 4 : index
    %c0_24 = arith.constant 0 : index
    %27 = vector.load %arg12[%c4_23, %c0_24] : memref<18x128xbf16, #tpu.memory_space<vmem>>, vector<2x128xbf16>
    %c2_25 = arith.constant 2 : index
    %c128_26 = arith.constant 128 : index
    %28 = vector.load %arg13[%c2_25, %c128_26] : memref<8x512xbf16, #tpu.memory_space<vmem>>, vector<2x128xbf16>
    tpu.vector_store %arg13[%c2_25, %c128_26], %27 {strides = array<i32>} : memref<8x512xbf16, #tpu.memory_space<vmem>>, vector<2x128xbf16>,
    %c10 = arith.constant 10 : index
    %c0_27 = arith.constant 0 : index
    %29 = vector.load %arg12[%c10, %c0_27] : memref<18x128xbf16, #tpu.memory_space<vmem>>, vector<2x128xbf16>
    %c4_28 = arith.constant 4 : index
    %c128_29 = arith.constant 128 : index
    %30 = vector.load %arg13[%c4_28, %c128_29] : memref<8x512xbf16, #tpu.memory_space<vmem>>, vector<2x128xbf16>
    tpu.vector_store %arg13[%c4_28, %c128_29], %29 {strides = array<i32>} : memref<8x512xbf16, #tpu.memory_space<vmem>>, vector<2x128xbf16>,
    %c13 = arith.constant 13 : index
    %c0_30 = arith.constant 0 : index
    %31 = vector.load %arg12[%c13, %c0_30] : memref<18x128xbf16, #tpu.memory_space<vmem>>, vector<2x128xbf16>
    %c6_31 = arith.constant 6 : index
    %c128_32 = arith.constant 128 : index
    %32 = vector.load %arg13[%c6_31, %c128_32] : memref<8x512xbf16, #tpu.memory_space<vmem>>, vector<2x128xbf16>
    tpu.vector_store %arg13[%c6_31, %c128_32], %31 {strides = array<i32>} : memref<8x512xbf16, #tpu.memory_space<vmem>>, vector<2x128xbf16>,
    %c3_33 = arith.constant 3 : index
    %c0_34 = arith.constant 0 : index
    %33 = vector.load %arg12[%c3_33, %c0_34] : memref<18x128xbf16, #tpu.memory_space<vmem>>, vector<2x128xbf16>
    %c0_35 = arith.constant 0 : index
    %c256 = arith.constant 256 : index
    %34 = vector.load %arg13[%c0_35, %c256] : memref<8x512xbf16, #tpu.memory_space<vmem>>, vector<2x128xbf16>
    tpu.vector_store %arg13[%c0_35, %c256], %33 {strides = array<i32>} : memref<8x512xbf16, #tpu.memory_space<vmem>>, vector<2x128xbf16>,
    %c6_36 = arith.constant 6 : index
    %c0_37 = arith.constant 0 : index
    %35 = vector.load %arg12[%c6_36, %c0_37] : memref<18x128xbf16, #tpu.memory_space<vmem>>, vector<2x128xbf16>
    %c2_38 = arith.constant 2 : index
    %c256_39 = arith.constant 256 : index
    %36 = vector.load %arg13[%c2_38, %c256_39] : memref<8x512xbf16, #tpu.memory_space<vmem>>, vector<2x128xbf16>
    tpu.vector_store %arg13[%c2_38, %c256_39], %35 {strides = array<i32>} : memref<8x512xbf16, #tpu.memory_space<vmem>>, vector<2x128xbf16>,
    %c12_40 = arith.constant 12 : index
    %c0_41 = arith.constant 0 : index
    %37 = vector.load %arg12[%c12_40, %c0_41] : memref<18x128xbf16, #tpu.memory_space<vmem>>, vector<2x128xbf16>
    %c4_42 = arith.constant 4 : index
    %c256_43 = arith.constant 256 : index
    %38 = vector.load %arg13[%c4_42, %c256_43] : memref<8x512xbf16, #tpu.memory_space<vmem>>, vector<2x128xbf16>
    tpu.vector_store %arg13[%c4_42, %c256_43], %37 {strides = array<i32>} : memref<8x512xbf16, #tpu.memory_space<vmem>>, vector<2x128xbf16>,
    %c15 = arith.constant 15 : index
    %c0_44 = arith.constant 0 : index
    %39 = vector.load %arg12[%c15, %c0_44] : memref<18x128xbf16, #tpu.memory_space<vmem>>, vector<2x128xbf16>
    %c6_45 = arith.constant 6 : index
    %c256_46 = arith.constant 256 : index
    %40 = vector.load %arg13[%c6_45, %c256_46] : memref<8x512xbf16, #tpu.memory_space<vmem>>, vector<2x128xbf16>
    tpu.vector_store %arg13[%c6_45, %c256_46], %39 {strides = array<i32>} : memref<8x512xbf16, #tpu.memory_space<vmem>>, vector<2x128xbf16>,
    %c4_47 = arith.constant 4 : index
    %c0_48 = arith.constant 0 : index
    %41 = vector.load %arg12[%c4_47, %c0_48] : memref<18x128xbf16, #tpu.memory_space<vmem>>, vector<2x128xbf16>
    %c0_49 = arith.constant 0 : index
    %c384 = arith.constant 384 : index
    %42 = vector.load %arg13[%c0_49, %c384] : memref<8x512xbf16, #tpu.memory_space<vmem>>, vector<2x128xbf16>
    tpu.vector_store %arg13[%c0_49, %c384], %41 {strides = array<i32>} : memref<8x512xbf16, #tpu.memory_space<vmem>>, vector<2x128xbf16>,
    %c7 = arith.constant 7 : index
    %c0_50 = arith.constant 0 : index
    %43 = vector.load %arg12[%c7, %c0_50] : memref<18x128xbf16, #tpu.memory_space<vmem>>, vector<2x128xbf16>
    %c2_51 = arith.constant 2 : index
    %c384_52 = arith.constant 384 : index
    %44 = vector.load %arg13[%c2_51, %c384_52] : memref<8x512xbf16, #tpu.memory_space<vmem>>, vector<2x128xbf16>
    tpu.vector_store %arg13[%c2_51, %c384_52], %43 {strides = array<i32>} : memref<8x512xbf16, #tpu.memory_space<vmem>>, vector<2x128xbf16>,
    %c13_53 = arith.constant 13 : index
    %c0_54 = arith.constant 0 : index
    %45 = vector.load %arg12[%c13_53, %c0_54] : memref<18x128xbf16, #tpu.memory_space<vmem>>, vector<2x128xbf16>
    %c4_55 = arith.constant 4 : index
    %c384_56 = arith.constant 384 : index
    %46 = vector.load %arg13[%c4_55, %c384_56] : memref<8x512xbf16, #tpu.memory_space<vmem>>, vector<2x128xbf16>
    tpu.vector_store %arg13[%c4_55, %c384_56], %45 {strides = array<i32>} : memref<8x512xbf16, #tpu.memory_space<vmem>>, vector<2x128xbf16>,
    %c16 = arith.constant 16 : index
    %c0_57 = arith.constant 0 : index
    %47 = vector.load %arg12[%c16, %c0_57] : memref<18x128xbf16, #tpu.memory_space<vmem>>, vector<2x128xbf16>
    %c6_58 = arith.constant 6 : index
    %c384_59 = arith.constant 384 : index
    %48 = vector.load %arg13[%c6_58, %c384_59] : memref<8x512xbf16, #tpu.memory_space<vmem>>, vector<2x128xbf16>
    tpu.vector_store %arg13[%c6_58, %c384_59], %47 {strides = array<i32>} : memref<8x512xbf16, #tpu.memory_space<vmem>>, vector<2x128xbf16>,
    %c0_60 = arith.constant 0 : index
    %c0_61 = arith.constant 0 : index
    %49 = vector.load %arg13[%c0_60, %c0_61] : memref<8x512xbf16, #tpu.memory_space<vmem>>, vector<8x512xbf16>
    %c0_62 = arith.constant 0 : index
    %c0_63 = arith.constant 0 : index
    %50 = vector.load %arg3[%c0_62, %c0_63] : memref<512x64xbf16, #tpu.memory_space<vmem>>, vector<512x64xbf16>
    %cst_64 = arith.constant dense<0.000000e+00> : vector<8x64xf32>
    %51 = tpu.matmul %49, %50, %cst_64 {dimension_numbers = #tpu.dot_dimension_numbers<[1], [0], [0], [1], [0, 0, 1, 1], [], []>} : vector<8x512xbf16>, vector<512x64xbf16>, vector<8x64xf32> -> vector<8x64xf32>
    %c0_65 = arith.constant 0 : index
    %c0_66 = arith.constant 0 : index
    %52 = vector.load %arg4[%c0_65, %c0_66] : memref<1x64xf32, #tpu.memory_space<vmem>>, vector<1x64xf32>
    %53 = vector.broadcast %52 : vector<1x64xf32> to vector<8x64xf32>
    %54 = arith.addf %51, %53 : vector<8x64xf32>
    %cst_67 = arith.constant 0.000000e+00 : f32
    %55 = vector.broadcast %cst_67 : f32 to vector<8x64xf32>
    %56 = arith.maximumf %54, %55 : vector<8x64xf32>
    %57 = arith.truncf %56 : vector<8x64xf32> to vector<8x64xbf16>
    %c0_68 = arith.constant 0 : index
    %c0_69 = arith.constant 0 : index
    %58 = vector.load %arg14[%c0_68, %c0_69] : memref<8x64xbf16, #tpu.memory_space<vmem>>, vector<8x64xbf16>
    tpu.vector_store %arg14[%c0_68, %c0_69], %57 {strides = array<i32>} : memref<8x64xbf16, #tpu.memory_space<vmem>>, vector<8x64xbf16>,
    %c0_70 = arith.constant 0 : index
    %c0_71 = arith.constant 0 : index
    %59 = vector.load %arg14[%c0_70, %c0_71] : memref<8x64xbf16, #tpu.memory_space<vmem>>, vector<1x64xbf16>
    %c0_72 = arith.constant 0 : index
    %c0_73 = arith.constant 0 : index
    %60 = vector.load %arg15[%c0_72, %c0_73] : memref<2x256xbf16, #tpu.memory_space<vmem>>, vector<1x64xbf16>
    tpu.vector_store %arg15[%c0_72, %c0_73], %59 {strides = array<i32>} : memref<2x256xbf16, #tpu.memory_space<vmem>>, vector<1x64xbf16>,
    %c4_74 = arith.constant 4 : index
    %c0_75 = arith.constant 0 : index
    %61 = vector.load %arg14[%c4_74, %c0_75] : memref<8x64xbf16, #tpu.memory_space<vmem>>, vector<1x64xbf16>
    %c1_76 = arith.constant 1 : index
    %c0_77 = arith.constant 0 : index
    %62 = vector.load %arg15[%c1_76, %c0_77] : memref<2x256xbf16, #tpu.memory_space<vmem>>, vector<1x64xbf16>
    tpu.vector_store %arg15[%c1_76, %c0_77], %61 {strides = array<i32>} : memref<2x256xbf16, #tpu.memory_space<vmem>>, vector<1x64xbf16>,
    %c1_78 = arith.constant 1 : index
    %c0_79 = arith.constant 0 : index
    %63 = vector.load %arg14[%c1_78, %c0_79] : memref<8x64xbf16, #tpu.memory_space<vmem>>, vector<1x64xbf16>
    %c0_80 = arith.constant 0 : index
    %c64_81 = arith.constant 64 : index
    %64 = vector.load %arg15[%c0_80, %c64_81] : memref<2x256xbf16, #tpu.memory_space<vmem>>, vector<1x64xbf16>
    tpu.vector_store %arg15[%c0_80, %c64_81], %63 {strides = array<i32>} : memref<2x256xbf16, #tpu.memory_space<vmem>>, vector<1x64xbf16>,
    %c5 = arith.constant 5 : index
    %c0_82 = arith.constant 0 : index
    %65 = vector.load %arg14[%c5, %c0_82] : memref<8x64xbf16, #tpu.memory_space<vmem>>, vector<1x64xbf16>
    %c1_83 = arith.constant 1 : index
    %c64_84 = arith.constant 64 : index
    %66 = vector.load %arg15[%c1_83, %c64_84] : memref<2x256xbf16, #tpu.memory_space<vmem>>, vector<1x64xbf16>
    tpu.vector_store %arg15[%c1_83, %c64_84], %65 {strides = array<i32>} : memref<2x256xbf16, #tpu.memory_space<vmem>>, vector<1x64xbf16>,
    %c2_85 = arith.constant 2 : index
    %c0_86 = arith.constant 0 : index
    %67 = vector.load %arg14[%c2_85, %c0_86] : memref<8x64xbf16, #tpu.memory_space<vmem>>, vector<1x64xbf16>
    %c0_87 = arith.constant 0 : index
    %c128_88 = arith.constant 128 : index
    %68 = vector.load %arg15[%c0_87, %c128_88] : memref<2x256xbf16, #tpu.memory_space<vmem>>, vector<1x64xbf16>
    tpu.vector_store %arg15[%c0_87, %c128_88], %67 {strides = array<i32>} : memref<2x256xbf16, #tpu.memory_space<vmem>>, vector<1x64xbf16>,
    %c6_89 = arith.constant 6 : index
    %c0_90 = arith.constant 0 : index
    %69 = vector.load %arg14[%c6_89, %c0_90] : memref<8x64xbf16, #tpu.memory_space<vmem>>, vector<1x64xbf16>
    %c1_91 = arith.constant 1 : index
    %c128_92 = arith.constant 128 : index
    %70 = vector.load %arg15[%c1_91, %c128_92] : memref<2x256xbf16, #tpu.memory_space<vmem>>, vector<1x64xbf16>
    tpu.vector_store %arg15[%c1_91, %c128_92], %69 {strides = array<i32>} : memref<2x256xbf16, #tpu.memory_space<vmem>>, vector<1x64xbf16>,
    %c3_93 = arith.constant 3 : index
    %c0_94 = arith.constant 0 : index
    %71 = vector.load %arg14[%c3_93, %c0_94] : memref<8x64xbf16, #tpu.memory_space<vmem>>, vector<1x64xbf16>
    %c0_95 = arith.constant 0 : index
    %c192 = arith.constant 192 : index
    %72 = vector.load %arg15[%c0_95, %c192] : memref<2x256xbf16, #tpu.memory_space<vmem>>, vector<1x64xbf16>
    tpu.vector_store %arg15[%c0_95, %c192], %71 {strides = array<i32>} : memref<2x256xbf16, #tpu.memory_space<vmem>>, vector<1x64xbf16>,
    %c7_96 = arith.constant 7 : index
    %c0_97 = arith.constant 0 : index
    %73 = vector.load %arg14[%c7_96, %c0_97] : memref<8x64xbf16, #tpu.memory_space<vmem>>, vector<1x64xbf16>
    %c1_98 = arith.constant 1 : index
    %c192_99 = arith.constant 192 : index
    %74 = vector.load %arg15[%c1_98, %c192_99] : memref<2x256xbf16, #tpu.memory_space<vmem>>, vector<1x64xbf16>
    tpu.vector_store %arg15[%c1_98, %c192_99], %73 {strides = array<i32>} : memref<2x256xbf16, #tpu.memory_space<vmem>>, vector<1x64xbf16>,
    %c0_100 = arith.constant 0 : index
    %c0_101 = arith.constant 0 : index
    %75 = vector.load %arg15[%c0_100, %c0_101] : memref<2x256xbf16, #tpu.memory_space<vmem>>, vector<2x256xbf16>
    %c0_102 = arith.constant 0 : index
    %c0_103 = arith.constant 0 : index
    %76 = vector.load %arg5[%c0_102, %c0_103] : memref<256x128xbf16, #tpu.memory_space<vmem>>, vector<256x128xbf16>
    %cst_104 = arith.constant dense<0.000000e+00> : vector<2x128xf32>
    %77 = tpu.matmul %75, %76, %cst_104 {dimension_numbers = #tpu.dot_dimension_numbers<[1], [0], [0], [1], [0, 0, 1, 1], [], []>} : vector<2x256xbf16>, vector<256x128xbf16>, vector<2x128xf32> -> vector<2x128xf32>
    %c0_105 = arith.constant 0 : index
    %c0_106 = arith.constant 0 : index
    %78 = vector.load %arg6[%c0_105, %c0_106] : memref<1x128xf32, #tpu.memory_space<vmem>>, vector<1x128xf32>
    %79 = vector.broadcast %78 : vector<1x128xf32> to vector<2x128xf32>
    %80 = arith.addf %77, %79 : vector<2x128xf32>
    %cst_107 = arith.constant 0.000000e+00 : f32
    %81 = vector.broadcast %cst_107 : f32 to vector<2x128xf32>
    %82 = arith.maximumf %80, %81 : vector<2x128xf32>
    %83 = arith.truncf %82 : vector<2x128xf32> to vector<2x128xbf16>
    %c0_108 = arith.constant 0 : index
    %c0_109 = arith.constant 0 : index
    %84 = vector.load %arg16[%c0_108, %c0_109] : memref<2x128xbf16, #tpu.memory_space<vmem>>, vector<2x128xbf16>
    tpu.vector_store %arg16[%c0_108, %c0_109], %83 {strides = array<i32>} : memref<2x128xbf16, #tpu.memory_space<vmem>>, vector<2x128xbf16>,
    %cst_110 = arith.constant 0.000000e+00 : f32
    %85 = vector.broadcast %cst_110 : f32 to vector<2x1024xf32>
    %c0_111 = arith.constant 0 : index
    %c0_112 = arith.constant 0 : index
    %86 = vector.load %arg16[%c0_111, %c0_112] : memref<2x128xbf16, #tpu.memory_space<vmem>>, vector<2x128xbf16>
    %c0_113 = arith.constant 0 : index
    %c0_114 = arith.constant 0 : index
    %87 = vector.load %arg7[%c0_113, %c0_114] : memref<128x1024xbf16, #tpu.memory_space<vmem>>, vector<128x1024xbf16>
    %cst_115 = arith.constant dense<0.000000e+00> : vector<2x1024xf32>
    %88 = tpu.matmul %86, %87, %cst_115 {dimension_numbers = #tpu.dot_dimension_numbers<[1], [0], [0], [1], [0, 0, 1, 1], [], []>} : vector<2x128xbf16>, vector<128x1024xbf16>, vector<2x1024xf32> -> vector<2x1024xf32>
    %89 = arith.addf %85, %88 : vector<2x1024xf32>
    %c0_116 = arith.constant 0 : index
    %c0_117 = arith.constant 0 : index
    %90 = vector.load %arg8[%c0_116, %c0_117] : memref<1x1024xf32, #tpu.memory_space<vmem>>, vector<1x1024xf32>
    %91 = vector.broadcast %90 : vector<1x1024xf32> to vector<2x1024xf32>
    %92 = arith.addf %89, %91 : vector<2x1024xf32>
    %cst_118 = arith.constant 0.000000e+00 : f32
    %93 = vector.broadcast %cst_118 : f32 to vector<2x1024xf32>
    %94 = arith.maximumf %92, %93 : vector<2x1024xf32>
    %95 = arith.truncf %94 : vector<2x1024xf32> to vector<2x1024xbf16>
    %c0_119 = arith.constant 0 : index
    %c0_120 = arith.constant 0 : index
    %96 = vector.load %arg9[%c0_119, %c0_120] : memref<1024x128xbf16, #tpu.memory_space<vmem>>, vector<1024x128xbf16>
    %cst_121 = arith.constant dense<0.000000e+00> : vector<2x128xf32>
    %97 = tpu.matmul %95, %96, %cst_121 {dimension_numbers = #tpu.dot_dimension_numbers<[1], [0], [0], [1], [0, 0, 1, 1], [], []>} : vector<2x1024xbf16>, vector<1024x128xbf16>, vector<2x128xf32> -> vector<2x128xf32>
    %c0_122 = arith.constant 0 : index
    %c0_123 = arith.constant 0 : index
    %98 = vector.load %arg10[%c0_122, %c0_123] : memref<1x128xf32, #tpu.memory_space<vmem>>, vector<1x128xf32>
    %99 = vector.broadcast %98 : vector<1x128xf32> to vector<2x128xf32>
    %100 = arith.addf %97, %99 : vector<2x128xf32>
    %c0_124 = arith.constant 0 : index
    %c0_125 = arith.constant 0 : index
    %101 = vector.load %arg11[%c0_124, %c0_125] : memref<2x128xf32, #tpu.memory_space<vmem>>, vector<2x128xf32>
    tpu.vector_store %arg11[%c0_124, %c0_125], %100 {strides = array<i32>} : memref<2x128xf32, #tpu.memory_space<vmem>>, vector<2x128xf32>,
    return
  }
}

</mosaic_0001>

<llo_original>
// kernel: atari_a2c_forward.1
$region0: #{atari_a2c_forward.1}
  #allocation0 [shape = 'u32[]', space=smem, size = 0x4, offset = 0x4, fixed_abs, tag = 'smem constant byte address 0x4 - core index']
  #allocation1 [shape = 'u32[144,128]{1,0:T(1,128)}', space=vmem, size = 0x12000, scoped, tag = 'internal scratch']
  #allocation2 [shape = 'bf16[18,128]{1,0:T(8,128)(2,1)}', space=vmem, size = 0x1800, scoped, tag = 'scratch operand']
  #allocation3 [shape = 'bf16[8,512]{1,0:T(8,128)(2,1)}', space=vmem, size = 0x2000, scoped, tag = 'scratch operand']
  #allocation4 [shape = 'bf16[8,64]{1,0:T(8,128)(2,1)}', space=vmem, size = 0x800, scoped, tag = 'scratch operand']
  #allocation5 [shape = 'bf16[2,256]{1,0:T(2,128)(2,1)}', space=vmem, size = 0x400, scoped, tag = 'scratch operand']
  #allocation6 [shape = 'bf16[2,128]{1,0:T(2,128)(2,1)}', space=vmem, size = 0x200, scoped, tag = 'scratch operand']
  %s0 = inlined_call_operand.vmem [shape: bf16[72,256], index: 0, kind: input, shape index: {}]
  %s1 = inlined_call_operand.vmem [shape: bf16[256,32], index: 1, kind: input, shape index: {}]
  %s2 = inlined_call_operand.vmem [shape: f32[1,32], index: 2, kind: input, shape index: {}]
  %s3 = inlined_call_operand.vmem [shape: bf16[512,64], index: 3, kind: input, shape index: {}]
  %s4 = inlined_call_operand.vmem [shape: f32[1,64], index: 4, kind: input, shape index: {}]
  %s5 = inlined_call_operand.vmem [shape: bf16[256,128], index: 5, kind: input, shape index: {}]
  %s6 = inlined_call_operand.vmem [shape: f32[1,128], index: 6, kind: input, shape index: {}]
  %s7 = inlined_call_operand.vmem [shape: bf16[128,1024], index: 7, kind: input, shape index: {}]
  %s8 = inlined_call_operand.vmem [shape: f32[1,1024], index: 8, kind: input, shape index: {}]
  %s9 = inlined_call_operand.vmem [shape: bf16[1024,128], index: 9, kind: input, shape index: {}]
  %s10 = inlined_call_operand.vmem [shape: f32[1,128], index: 10, kind: input, shape index: {}]
  %s11 = inlined_call_operand.vmem [shape: f32[2,128], index: 11, kind: output, shape index: {}]
  %s12 = sld [smem:[#allocation0]]
  $region54: #{atari_a2c_forward.1} parent=0
    _
  %s14 = ssub.s32 1, %s12
  %s15 = scalar_select 0, %s14, %s12
  // Predicated region
  $region2: #{atari_a2c_forward.1} parent=0 // pred_check
    _
  $region3: #{atari_a2c_forward.1} parent=0 // pred_check_branch
    %17 = sbr.rel (0) target = $region5
  $region4: #{atari_a2c_forward.1} parent=0 // pred_region
    _
  $region5: #{atari_a2c_forward.1} parent=0 // pred_fallthru
    _
  // Predicated region
  $region6: #{atari_a2c_forward.1} parent=0 // pred_check
    _
  $region7: #{atari_a2c_forward.1} parent=0 // pred_check_branch
    %19 = sbr.rel (0) target = $region9
  $region8: #{atari_a2c_forward.1} parent=0 // pred_region
    _
  $region9: #{atari_a2c_forward.1} parent=0 // pred_fallthru
    _
  // Predicated region
  $region10: #{atari_a2c_forward.1} parent=0 // pred_check
    _
  $region11: #{atari_a2c_forward.1} parent=0 // pred_check_branch
    %21 = sbr.rel (0) target = $region13
  $region12: #{atari_a2c_forward.1} parent=0 // pred_region
    _
  $region13: #{atari_a2c_forward.1} parent=0 // pred_fallthru
    _
  // Predicated region
  $region14: #{atari_a2c_forward.1} parent=0 // pred_check
    _
  $region15: #{atari_a2c_forward.1} parent=0 // pred_check_branch
    %23 = sbr.rel (0) target = $region17
  $region16: #{atari_a2c_forward.1} parent=0 // pred_region
    _
  $region17: #{atari_a2c_forward.1} parent=0 // pred_fallthru
    _
  // Predicated region
  $region18: #{atari_a2c_forward.1} parent=0 // pred_check
    _
  $region19: #{atari_a2c_forward.1} parent=0 // pred_check_branch
    %25 = sbr.rel (0) target = $region21
  $region20: #{atari_a2c_forward.1} parent=0 // pred_region
    _
  $region21: #{atari_a2c_forward.1} parent=0 // pred_fallthru
    _
  // Predicated region
  $region22: #{atari_a2c_forward.1} parent=0 // pred_check
    _
  $region23: #{atari_a2c_forward.1} parent=0 // pred_check_branch
    %27 = sbr.rel (0) target = $region25
  $region24: #{atari_a2c_forward.1} parent=0 // pred_region
    _
  $region25: #{atari_a2c_forward.1} parent=0 // pred_fallthru
    _
  // Predicated region
  $region26: #{atari_a2c_forward.1} parent=0 // pred_check
    _
  $region27: #{atari_a2c_forward.1} parent=0 // pred_check_branch
    %29 = sbr.rel (0) target = $region29
  $region28: #{atari_a2c_forward.1} parent=0 // pred_region
    _
  $region29: #{atari_a2c_forward.1} parent=0 // pred_fallthru
    _
  // Predicated region
  $region30: #{atari_a2c_forward.1} parent=0 // pred_check
    _
  $region31: #{atari_a2c_forward.1} parent=0 // pred_check_branch
    %31 = sbr.rel (0) target = $region33
  $region32: #{atari_a2c_forward.1} parent=0 // pred_region
    _
  $region33: #{atari_a2c_forward.1} parent=0 // pred_fallthru
    _
  // Predicated region
  $region34: #{atari_a2c_forward.1} parent=0 // pred_check
    _
  $region35: #{atari_a2c_forward.1} parent=0 // pred_check_branch
    %33 = sbr.rel (0) target = $region37
  $region36: #{atari_a2c_forward.1} parent=0 // pred_region
    _
  $region37: #{atari_a2c_forward.1} parent=0 // pred_fallthru
    _
  // Predicated region
  $region38: #{atari_a2c_forward.1} parent=0 // pred_check
    _
  $region39: #{atari_a2c_forward.1} parent=0 // pred_check_branch
    %35 = sbr.rel (0) target = $region41
  $region40: #{atari_a2c_forward.1} parent=0 // pred_region
    _
  $region41: #{atari_a2c_forward.1} parent=0 // pred_fallthru
    _
  // Predicated region
  $region42: #{atari_a2c_forward.1} parent=0 // pred_check
    _
  $region43: #{atari_a2c_forward.1} parent=0 // pred_check_branch
    %37 = sbr.rel (0) target = $region45
  $region44: #{atari_a2c_forward.1} parent=0 // pred_region
    _
  $region45: #{atari_a2c_forward.1} parent=0 // pred_fallthru
    _
  %v39 = vld [vmem:[%s0] sm:$0xff]
  %v40 = vld [vmem:[%s0 + $0x8] sm:$0xff]
  %v41 = vld [vmem:[%s0 + $0x10] sm:$0xff]
  %v42 = vld [vmem:[%s0 + $0x18] sm:$0xff]
  %v43 = vld [vmem:[%s0 + $0x20] sm:$0xff]
  %v44 = vld [vmem:[%s0 + $0x28] sm:$0xff]
  %v45 = vld [vmem:[%s0 + $0x30] sm:$0xff]
  %v46 = vld [vmem:[%s0 + $0x38] sm:$0xff]
  %v47 = vld [vmem:[%s0 + $0x40] sm:$0xff]
  %v48 = vld [vmem:[%s1] sm:$0xf]
  %v49 = vld [vmem:[%s1 + $0x4] sm:$0xf]
  %v50 = vld [vmem:[%s1 + $0x8] sm:$0xf]
  %v51 = vld [vmem:[%s1 + $0xc] sm:$0xf]
  %v52 = vld [vmem:[%s1 + $0x10] sm:$0xf]
  %v53 = vld [vmem:[%s1 + $0x14] sm:$0xf]
  %v54 = vld [vmem:[%s1 + $0x18] sm:$0xf]
  %v55 = vld [vmem:[%s1 + $0x1c] sm:$0xf]
  %v56 = vld [vmem:[%s1 + $0x20] sm:$0xf]
  %v57 = vld [vmem:[%s1 + $0x24] sm:$0xf]
  %v58 = vld [vmem:[%s1 + $0x28] sm:$0xf]
  %v59 = vld [vmem:[%s1 + $0x2c] sm:$0xf]
  %v60 = vld [vmem:[%s1 + $0x30] sm:$0xf]
  %v61 = vld [vmem:[%s1 + $0x34] sm:$0xf]
  %v62 = vld [vmem:[%s1 + $0x38] sm:$0xf]
  %v63 = vld [vmem:[%s1 + $0x3c] sm:$0xf]
  %v64 = vld [vmem:[%s1 + $0x40] sm:$0xf]
  %v65 = vld [vmem:[%s1 + $0x44] sm:$0xf]
  %v66 = vld [vmem:[%s1 + $0x48] sm:$0xf]
  %v67 = vld [vmem:[%s1 + $0x4c] sm:$0xf]
  %v68 = vld [vmem:[%s1 + $0x50] sm:$0xf]
  %v69 = vld [vmem:[%s1 + $0x54] sm:$0xf]
  %v70 = vld [vmem:[%s1 + $0x58] sm:$0xf]
  %v71 = vld [vmem:[%s1 + $0x5c] sm:$0xf]
  %v72 = vld [vmem:[%s1 + $0x60] sm:$0xf]
  %v73 = vld [vmem:[%s1 + $0x64] sm:$0xf]
  %v74 = vld [vmem:[%s1 + $0x68] sm:$0xf]
  %v75 = vld [vmem:[%s1 + $0x6c] sm:$0xf]
  %v76 = vld [vmem:[%s1 + $0x70] sm:$0xf]
  %v77 = vld [vmem:[%s1 + $0x74] sm:$0xf]
  %v78 = vld [vmem:[%s1 + $0x78] sm:$0xf]
  %v79 = vld [vmem:[%s1 + $0x7c] sm:$0xf]
  %v80 = vld [vmem:[%s2] sm:$0x1]
  %v82 = vlaneseq
  %v83 = vshrl.u32 %v82, 7
  %v84 = vsub.s32 0, %v83
  %v85 = vrot.slane %v80, %v84
  %v96 = vunpack.c.l.b16 %v39
  %v97 = vunpack.c.h.b16 %v39
  %v98 = vunpack.c.l.b16 %v40
  %v99 = vunpack.c.h.b16 %v40
  %v100 = vunpack.c.l.b16 %v41
  %v101 = vunpack.c.h.b16 %v41
  %v102 = vunpack.c.l.b16 %v42
  %v103 = vunpack.c.h.b16 %v42
  %v104 = vunpack.c.l.b16 %v43
  %v105 = vunpack.c.h.b16 %v43
  %v106 = vunpack.c.l.b16 %v44
  %v107 = vunpack.c.h.b16 %v44
  %v108 = vunpack.c.l.b16 %v45
  %v109 = vunpack.c.h.b16 %v45
  %v110 = vunpack.c.l.b16 %v46
  %v111 = vunpack.c.h.b16 %v46
  %v112 = vunpack.c.l.b16 %v47
  %v113 = vunpack.c.h.b16 %v47
  %v114 = vpack.c.b16 %v98, %v96
  %v115 = vpack.c.b16 %v99, %v97
  %v116 = vpack.c.b16 %v102, %v100
  %v117 = vpack.c.b16 %v103, %v101
  %v118 = vpack.c.b16 %v106, %v104
  %v119 = vpack.c.b16 %v107, %v105
  %v120 = vpack.c.b16 %v110, %v108
  %v121 = vpack.c.b16 %v111, %v109
  %v122 = vpack.c.b16 %v112, %v112
  %v123 = vpack.c.b16 %v113, %v113
  %v166 = vunpack.c.l.b16 %v48
  %v167 = vunpack.c.l.b16 %v49
  %v168 = vunpack.c.l.b16 %v50
  %v169 = vunpack.c.l.b16 %v51
  %v170 = vunpack.c.l.b16 %v52
  %v171 = vunpack.c.l.b16 %v53
  %v172 = vunpack.c.l.b16 %v54
  %v173 = vunpack.c.l.b16 %v55
  %v174 = vunpack.c.l.b16 %v56
  %v175 = vunpack.c.l.b16 %v57
  %v176 = vunpack.c.l.b16 %v58
  %v177 = vunpack.c.l.b16 %v59
  %v178 = vunpack.c.l.b16 %v60
  %v179 = vunpack.c.l.b16 %v61
  %v180 = vunpack.c.l.b16 %v62
  %v181 = vunpack.c.l.b16 %v63
  %v182 = vunpack.c.l.b16 %v64
  %v183 = vunpack.c.l.b16 %v65
  %v184 = vunpack.c.l.b16 %v66
  %v185 = vunpack.c.l.b16 %v67
  %v186 = vunpack.c.l.b16 %v68
  %v187 = vunpack.c.l.b16 %v69
  %v188 = vunpack.c.l.b16 %v70
  %v189 = vunpack.c.l.b16 %v71
  %v190 = vunpack.c.l.b16 %v72
  %v191 = vunpack.c.l.b16 %v73
  %v192 = vunpack.c.l.b16 %v74
  %v193 = vunpack.c.l.b16 %v75
  %v194 = vunpack.c.l.b16 %v76
  %v195 = vunpack.c.l.b16 %v77
  %v196 = vunpack.c.l.b16 %v78
  %v197 = vunpack.c.l.b16 %v79
  %v198 = vpack.c.b16 %v167, %v166
  %v199 = vpack.c.b16 %v169, %v168
  %v200 = vpack.c.b16 %v171, %v170
  %v201 = vpack.c.b16 %v173, %v172
  %v202 = vpack.c.b16 %v175, %v174
  %v203 = vpack.c.b16 %v177, %v176
  %v204 = vpack.c.b16 %v179, %v178
  %v205 = vpack.c.b16 %v181, %v180
  %v206 = vpack.c.b16 %v183, %v182
  %v207 = vpack.c.b16 %v185, %v184
  %v208 = vpack.c.b16 %v187, %v186
  %v209 = vpack.c.b16 %v189, %v188
  %v210 = vpack.c.b16 %v191, %v190
  %v211 = vpack.c.b16 %v193, %v192
  %v212 = vpack.c.b16 %v195, %v194
  %v213 = vpack.c.b16 %v197, %v196
  %230 = vmatprep.subr.bf16.mxu0 0
  %231 = vmatpush1.bf16.msra.mxu0 %v198
  %232 = vmatprep.subr.bf16.mxu0 0
  %233 = vmatpush1.bf16.msra.mxu0 %v199
  %234 = vmatprep.subr.bf16.mxu0 0
  %235 = vmatpush1.bf16.msra.mxu0 %v200
  %236 = vmatprep.subr.bf16.mxu0 0
  %237 = vmatpush1.bf16.msra.mxu0 %v201
  %238 = vmatprep.subr.bf16.mxu0 0
  %239 = vmatpush1.bf16.msra.mxu0 %v202
  %240 = vmatprep.subr.bf16.mxu0 0
  %241 = vmatpush1.bf16.msra.mxu0 %v203
  %242 = vmatprep.subr.bf16.mxu0 0
  %243 = vmatpush1.bf16.msra.mxu0 %v204
  %244 = vmatprep.subr.bf16.mxu0 0
  %245 = vmatpush1.bf16.msra.mxu0 %v205
  %246 = vmatprep.subr.bf16.mxu0 0
  %247 = vmatpush1.bf16.msra.mxu0 %v206
  %248 = vmatprep.subr.bf16.mxu0 0
  %249 = vmatpush1.bf16.msra.mxu0 %v207
  %250 = vmatprep.subr.bf16.mxu0 0
  %251 = vmatpush1.bf16.msra.mxu0 %v208
  %252 = vmatprep.subr.bf16.mxu0 0
  %253 = vmatpush1.bf16.msra.mxu0 %v209
  %254 = vmatprep.subr.bf16.mxu0 0
  %255 = vmatpush1.bf16.msra.mxu0 %v210
  %256 = vmatprep.subr.bf16.mxu0 0
  %257 = vmatpush1.bf16.msra.mxu0 %v211
  %258 = vmatprep.subr.bf16.mxu0 0
  %259 = vmatpush1.bf16.msra.mxu0 %v212
  %260 = vmatprep.subr.bf16.mxu0 0
  %261 = vmatpush1.bf16.msra.mxu0 %v213
  %262 = vmatprep.mubr.bf16.mxu0 %v115
  %263 = vmatmul.mubr.bf16.gmra.mrb[0].mxu0 %v114
  %v264 = vpop.f32.mrb[0].mxu0
  %v265 = vadd.f32 %v85, %v264
  %v266 = vpop.f32.mrb[0].mxu0
  %v267 = vpop.f32.mrb[0].mxu0
  %v268 = vadd.f32 %v85, %v267
  %v269 = vpop.f32.mrb[0].mxu0
  %270 = vmatprep.mubr.bf16.mxu0 %v117
  %271 = vmatmul.mubr.bf16.gmra.mrb[0].mxu0 %v116
  %v272 = vpop.f32.mrb[0].mxu0
  %v273 = vadd.f32 %v85, %v272
  %v274 = vpop.f32.mrb[0].mxu0
  %v275 = vpop.f32.mrb[0].mxu0
  %v276 = vadd.f32 %v85, %v275
  %v277 = vpop.f32.mrb[0].mxu0
  %278 = vmatprep.mubr.bf16.mxu0 %v119
  %279 = vmatmul.mubr.bf16.gmra.mrb[0].mxu0 %v118
  %v280 = vpop.f32.mrb[0].mxu0
  %v281 = vadd.f32 %v85, %v280
  %v282 = vpop.f32.mrb[0].mxu0
  %v283 = vpop.f32.mrb[0].mxu0
  %v284 = vadd.f32 %v85, %v283
  %v285 = vpop.f32.mrb[0].mxu0
  %286 = vmatprep.mubr.bf16.mxu0 %v121
  %287 = vmatmul.mubr.bf16.gmra.mrb[0].mxu0 %v120
  %v288 = vpop.f32.mrb[0].mxu0
  %v289 = vadd.f32 %v85, %v288
  %v290 = vpop.f32.mrb[0].mxu0
  %v291 = vpop.f32.mrb[0].mxu0
  %v292 = vadd.f32 %v85, %v291
  %v293 = vpop.f32.mrb[0].mxu0
  %294 = vmatprep.mubr.bf16.mxu0 %v123
  %295 = vmatmul.mubr.bf16.gmra.mrb[0].mxu0 %v122
  %v296 = vpop.f32.mrb[0].mxu0
  %v297 = vadd.f32 %v85, %v296
  %v298 = vpop.f32.mrb[0].mxu0
  %v299 = vpop.f32.mrb[0].mxu0
  %v300 = vpop.f32.mrb[0].mxu0
  %301 = vdwg.mxu0
  %v302 = vmax.f32 %v265, 0.0
  %v303 = vmax.f32 %v268, 0.0
  %v304 = vmax.f32 %v273, 0.0
  %v305 = vmax.f32 %v276, 0.0
  %v306 = vmax.f32 %v281, 0.0
  %v307 = vmax.f32 %v284, 0.0
  %v308 = vmax.f32 %v289, 0.0
  %v309 = vmax.f32 %v292, 0.0
  %v310 = vmax.f32 %v297, 0.0
  %v311 = vpack.c.bf16 %v303, %v302
  %v312 = vpack.c.bf16 %v305, %v304
  %v313 = vpack.c.bf16 %v307, %v306
  %v314 = vpack.c.bf16 %v309, %v308
  %v315 = vpack.c.bf16 %v310, %v310
  %v318 = vunpack.c.l.b16 %v311
  %v319 = vunpack.c.h.b16 %v311
  %v320 = vunpack.c.l.b16 %v312
  %v321 = vpack.c.b16 %v318, %v318
  %v322 = vpack.c.b16 %v319, %v319
  %v323 = vpack.c.b16 %v320, %v320
  %vm327 = vcmask 257024
  %328 = vst.msk [vmem:[#allocation2] sm:$0xf] %vm327, %v321
  %329 = vst.msk [vmem:[#allocation2 + $0x4] sm:$0xf] %vm327, %v322
  %vm330 = vcmask 253952
  %331 = vst.msk [vmem:[#allocation2 + $0x8] sm:$0x1] %vm330, %v323
  %v333 = vunpack.c.h.b16 %v312
  %v334 = vunpack.c.l.b16 %v313
  %v335 = vpack.c.b16 %v333, %v333
  %v336 = vpack.c.b16 %v334, %v334
  %vm337 = vcmask 1042432
  %vm338 = vcmask 1046532
  %vm339 = vmor %vm337, %vm338
  %v340 = vrot.slane %v323, 5
  %v341 = vrot.slane %v340, 4
  %v342 = vrot.slane %v335, 5
  %v343 = vsel %vm339, %v341, %v342
  %v344 = vrot.slane %v342, 4
  %v345 = vrot.slane %v336, 5
  %v346 = vsel %vm339, %v344, %v345
  %v347 = vrot.slane %v345, 4
  %348 = vrot.lane.b32.xlu0 %v343, 32
  %v349 = vpop.permute.xlu0 %348
  %350 = vrot.lane.b32.xlu0 %v346, 32
  %v351 = vpop.permute.xlu0 %350
  %352 = vrot.lane.b32.xlu0 %v347, 32
  %v353 = vpop.permute.xlu0 %352
  %vm357 = vcmask 519424
  %358 = vst.msk [vmem:[#allocation2] sm:$0xf] %vm357, %v349
  %359 = vst.msk [vmem:[#allocation2 + $0x4] sm:$0xf] %vm357, %v351
  %vm360 = vcmask 516352
  %361 = vst.msk [vmem:[#allocation2 + $0x8] sm:$0x1] %vm360, %v353
  %v363 = vunpack.c.h.b16 %v313
  %v364 = vunpack.c.l.b16 %v314
  %v365 = vpack.c.b16 %v363, %v363
  %v366 = vpack.c.b16 %v364, %v364
  %vm367 = vcmask 1041408
  %vm368 = vcmask 1045508
  %vm369 = vmor %vm367, %vm368
  %v370 = vrot.slane %v336, 6
  %v371 = vrot.slane %v370, 4
  %v372 = vrot.slane %v365, 6
  %v373 = vsel %vm369, %v371, %v372
  %v374 = vrot.slane %v372, 4
  %v375 = vrot.slane %v366, 6
  %v376 = vsel %vm369, %v374, %v375
  %v377 = vrot.slane %v375, 4
  %378 = vrot.lane.b32.xlu0 %v373, 64
  %v379 = vpop.permute.xlu0 %378
  %380 = vrot.lane.b32.xlu0 %v376, 64
  %v381 = vpop.permute.xlu0 %380
  %382 = vrot.lane.b32.xlu0 %v377, 64
  %v383 = vpop.permute.xlu0 %382
  %vm387 = vcmask 781824
  %388 = vst.msk [vmem:[#allocation2] sm:$0xf] %vm387, %v379
  %389 = vst.msk [vmem:[#allocation2 + $0x4] sm:$0xf] %vm387, %v381
  %vm390 = vcmask 778752
  %391 = vst.msk [vmem:[#allocation2 + $0x8] sm:$0x1] %vm390, %v383
  %v393 = vunpack.c.h.b16 %v314
  %v394 = vunpack.c.l.b16 %v315
  %v395 = vpack.c.b16 %v393, %v393
  %v396 = vpack.c.b16 %v394, %v394
  %vm397 = vcmask 1040384
  %vm398 = vcmask 1044484
  %vm399 = vmor %vm397, %vm398
  %v400 = vrot.slane %v366, 7
  %v401 = vrot.slane %v400, 4
  %v402 = vrot.slane %v395, 7
  %v403 = vsel %vm399, %v401, %v402
  %v404 = vrot.slane %v402, 4
  %v405 = vrot.slane %v396, 7
  %v406 = vsel %vm399, %v404, %v405
  %v407 = vrot.slane %v405, 4
  %408 = vrot.lane.b32.xlu0 %v403, 96
  %v409 = vpop.permute.xlu0 %408
  %410 = vrot.lane.b32.xlu0 %v406, 96
  %v411 = vpop.permute.xlu0 %410
  %412 = vrot.lane.b32.xlu0 %v407, 96
  %v413 = vpop.permute.xlu0 %412
  %vm417 = vcmask 1044224
  %418 = vst.msk [vmem:[#allocation2] sm:$0xf] %vm417, %v409
  %419 = vst.msk [vmem:[#allocation2 + $0x4] sm:$0xf] %vm417, %v411
  %vm420 = vcmask 1041152
  %421 = vst.msk [vmem:[#allocation2 + $0x8] sm:$0x1] %vm420, %v413
  %v422 = vld [vmem:[#allocation2] sm:$0x1]
  %423 = vst [vmem:[#allocation3] sm:$0x1] %v422
  %v424 = vld [vmem:[#allocation2] sm:$0x6]
  %v426 = vshrl.u32 %v424, 16
  %v428 = vrot.slane %v426, 4
  %v429 = vshll.u32 %v424, 16
  %v431 = vrot.slane %v429, 5
  %v432 = vor.u32 %v428, %v431
  %v433 = vrot.slane %v432, 4
  %435 = vst [vmem:[#allocation3] sm:$0x2] %v433
  %v436 = vld [vmem:[#allocation2 + $0x4] sm:$0x3]
  %v438 = vshrl.u32 %v436, 16
  %v440 = vrot.slane %v438, 6
  %v441 = vshll.u32 %v436, 16
  %v443 = vrot.slane %v441, 7
  %v444 = vor.u32 %v440, %v443
  %446 = vst [vmem:[#allocation3] sm:$0x4] %v444
  %v447 = vld [vmem:[#allocation2 + $0x4] sm:$0x4]
  %v449 = vrot.slane %v447, 7
  %451 = vst [vmem:[#allocation3] sm:$0x8] %v449
  %v452 = vld [vmem:[#allocation2] sm:$0x3]
  %v454 = vshrl.u32 %v452, 16
  %v456 = vrot.slane %v454, 4
  %v457 = vshll.u32 %v452, 16
  %v459 = vrot.slane %v457, 5
  %v460 = vor.u32 %v456, %v459
  %v461 = vrot.slane %v460, 4
  %463 = vst [vmem:[#allocation3 + $0x4] sm:$0x1] %v461
  %v464 = vld [vmem:[#allocation2] sm:$0x4]
  %v466 = vrot.slane %v464, 5
  %v467 = vrot.slane %v466, 4
  %469 = vst [vmem:[#allocation3 + $0x4] sm:$0x2] %v467
  %v470 = vld [vmem:[#allocation2 + $0x4] sm:$0x2]
  %v472 = vrot.slane %v470, 7
  %474 = vst [vmem:[#allocation3 + $0x4] sm:$0x4] %v472
  %v475 = vld [vmem:[#allocation2 + $0x4] sm:$0xc]
  %v477 = vshrl.u32 %v475, 16
  %v479 = vrot.slane %v477, 7
  %v480 = vshll.u32 %v475, 16
  %v482 = vor.u32 %v479, %v480
  %484 = vst [vmem:[#allocation3 + $0x4] sm:$0x8] %v482
  %v485 = vld [vmem:[#allocation2] sm:$0x6]
  %v487 = vshrl.u32 %v485, 16
  %v489 = vrot.slane %v487, 5
  %v490 = vshll.u32 %v485, 16
  %v492 = vrot.slane %v490, 6
  %v493 = vor.u32 %v489, %v492
  %v494 = vrot.slane %v493, 4
  %496 = vst [vmem:[#allocation3 + $0x8] sm:$0x1] %v494
  %v497 = vld [vmem:[#allocation2] sm:$0x8]
  %v499 = vrot.slane %v497, 6
  %v500 = vrot.slane %v499, 4
  %502 = vst [vmem:[#allocation3 + $0x8] sm:$0x2] %v500
  %v503 = vld [vmem:[#allocation2 + $0x4] sm:$0x4]
  %504 = vst [vmem:[#allocation3 + $0x8] sm:$0x4] %v503
  %v505 = vld [vmem:[#allocation2 + $0x4] sm:$0x8]
  %v506 = vld [vmem:[#allocation2 + $0x8] sm:$0x1]
  %vm507 = vsmask.f32 3328
  %vm508 = vsmask.f32 7440
  %vm509 = vmor %vm507, %vm508
  %v511 = vshrl.u32 %v505, 16
  %v513 = vrot.slane %v511, 4
  %v514 = vrot.slane %v513, 4
  %v516 = vshll.u32 %v506, 16
  %v518 = vrot.slane %v516, 5
  %v519 = vsel %vm509, %v514, %v518
  %521 = vst [vmem:[#allocation3 + $0x8] sm:$0x8] %v519
  %v522 = vld [vmem:[#allocation2] sm:$0x4]
  %v524 = vrot.slane %v522, 6
  %v525 = vrot.slane %v524, 4
  %527 = vst [vmem:[#allocation3 + $0xc] sm:$0x1] %v525
  %v528 = vld [vmem:[#allocation2] sm:$0x8]
  %v529 = vld [vmem:[#allocation2 + $0x4] sm:$0x1]
  %vm530 = vsmask.f32 1280
  %vm531 = vsmask.f32 5392
  %vm532 = vmor %vm530, %vm531
  %v534 = vshrl.u32 %v528, 16
  %v536 = vrot.slane %v534, 6
  %v537 = vrot.slane %v536, 4
  %v539 = vshll.u32 %v529, 16
  %v541 = vrot.slane %v539, 7
  %v542 = vsel %vm532, %v537, %v541
  %544 = vst [vmem:[#allocation3 + $0xc] sm:$0x2] %v542
  %v545 = vld [vmem:[#allocation2 + $0x4] sm:$0xc]
  %v547 = vshrl.u32 %v545, 16
  %v549 = vrot.slane %v547, 4
  %v550 = vshll.u32 %v545, 16
  %v552 = vrot.slane %v550, 5
  %v553 = vor.u32 %v549, %v552
  %v554 = vrot.slane %v553, 4
  %556 = vst [vmem:[#allocation3 + $0xc] sm:$0x4] %v554
  %v557 = vld [vmem:[#allocation2 + $0x8] sm:$0x1]
  %v559 = vrot.slane %v557, 5
  %561 = vst [vmem:[#allocation3 + $0xc] sm:$0x8] %v559
  %v562 = vld [vmem:[#allocation3] sm:$0xff]
  %v563 = vld [vmem:[#allocation3 + $0x8] sm:$0xff]
  %v564 = vld [vmem:[%s3] sm:$0xf]
  %v565 = vld [vmem:[%s3 + $0x4] sm:$0xf]
  %v566 = vld [vmem:[%s3 + $0x8] sm:$0xf]
  %v567 = vld [vmem:[%s3 + $0xc] sm:$0xf]
  %v568 = vld [vmem:[%s3 + $0x10] sm:$0xf]
  %v569 = vld [vmem:[%s3 + $0x14] sm:$0xf]
  %v570 = vld [vmem:[%s3 + $0x18] sm:$0xf]
  %v571 = vld [vmem:[%s3 + $0x1c] sm:$0xf]
  %v572 = vld [vmem:[%s3 + $0x20] sm:$0xf]
  %v573 = vld [vmem:[%s3 + $0x24] sm:$0xf]
  %v574 = vld [vmem:[%s3 + $0x28] sm:$0xf]
  %v575 = vld [vmem:[%s3 + $0x2c] sm:$0xf]
  %v576 = vld [vmem:[%s3 + $0x30] sm:$0xf]
  %v577 = vld [vmem:[%s3 + $0x34] sm:$0xf]
  %v578 = vld [vmem:[%s3 + $0x38] sm:$0xf]
  %v579 = vld [vmem:[%s3 + $0x3c] sm:$0xf]
  %v580 = vld [vmem:[%s3 + $0x40] sm:$0xf]
  %v581 = vld [vmem:[%s3 + $0x44] sm:$0xf]
  %v582 = vld [vmem:[%s3 + $0x48] sm:$0xf]
  %v583 = vld [vmem:[%s3 + $0x4c] sm:$0xf]
  %v584 = vld [vmem:[%s3 + $0x50] sm:$0xf]
  %v585 = vld [vmem:[%s3 + $0x54] sm:$0xf]
  %v586 = vld [vmem:[%s3 + $0x58] sm:$0xf]
  %v587 = vld [vmem:[%s3 + $0x5c] sm:$0xf]
  %v588 = vld [vmem:[%s3 + $0x60] sm:$0xf]
  %v589 = vld [vmem:[%s3 + $0x64] sm:$0xf]
  %v590 = vld [vmem:[%s3 + $0x68] sm:$0xf]
  %v591 = vld [vmem:[%s3 + $0x6c] sm:$0xf]
  %v592 = vld [vmem:[%s3 + $0x70] sm:$0xf]
  %v593 = vld [vmem:[%s3 + $0x74] sm:$0xf]
  %v594 = vld [vmem:[%s3 + $0x78] sm:$0xf]
  %v595 = vld [vmem:[%s3 + $0x7c] sm:$0xf]
  %v596 = vld [vmem:[%s3 + $0x80] sm:$0xf]
  %v597 = vld [vmem:[%s3 + $0x84] sm:$0xf]
  %v598 = vld [vmem:[%s3 + $0x88] sm:$0xf]
  %v599 = vld [vmem:[%s3 + $0x8c] sm:$0xf]
  %v600 = vld [vmem:[%s3 + $0x90] sm:$0xf]
  %v601 = vld [vmem:[%s3 + $0x94] sm:$0xf]
  %v602 = vld [vmem:[%s3 + $0x98] sm:$0xf]
  %v603 = vld [vmem:[%s3 + $0x9c] sm:$0xf]
  %v604 = vld [vmem:[%s3 + $0xa0] sm:$0xf]
  %v605 = vld [vmem:[%s3 + $0xa4] sm:$0xf]
  %v606 = vld [vmem:[%s3 + $0xa8] sm:$0xf]
  %v607 = vld [vmem:[%s3 + $0xac] sm:$0xf]
  %v608 = vld [vmem:[%s3 + $0xb0] sm:$0xf]
  %v609 = vld [vmem:[%s3 + $0xb4] sm:$0xf]
  %v610 = vld [vmem:[%s3 + $0xb8] sm:$0xf]
  %v611 = vld [vmem:[%s3 + $0xbc] sm:$0xf]
  %v612 = vld [vmem:[%s3 + $0xc0] sm:$0xf]
  %v613 = vld [vmem:[%s3 + $0xc4] sm:$0xf]
  %v614 = vld [vmem:[%s3 + $0xc8] sm:$0xf]
  %v615 = vld [vmem:[%s3 + $0xcc] sm:$0xf]
  %v616 = vld [vmem:[%s3 + $0xd0] sm:$0xf]
  %v617 = vld [vmem:[%s3 + $0xd4] sm:$0xf]
  %v618 = vld [vmem:[%s3 + $0xd8] sm:$0xf]
  %v619 = vld [vmem:[%s3 + $0xdc] sm:$0xf]
  %v620 = vld [vmem:[%s3 + $0xe0] sm:$0xf]
  %v621 = vld [vmem:[%s3 + $0xe4] sm:$0xf]
  %v622 = vld [vmem:[%s3 + $0xe8] sm:$0xf]
  %v623 = vld [vmem:[%s3 + $0xec] sm:$0xf]
  %v624 = vld [vmem:[%s3 + $0xf0] sm:$0xf]
  %v625 = vld [vmem:[%s3 + $0xf4] sm:$0xf]
  %v626 = vld [vmem:[%s3 + $0xf8] sm:$0xf]
  %v627 = vld [vmem:[%s3 + $0xfc] sm:$0xf]
  %v628 = vld [vmem:[%s4] sm:$0x1]
  %v630 = vlaneseq
  %v631 = vshrl.u32 %v630, 7
  %v632 = vsub.s32 0, %v631
  %v633 = vrot.slane %v628, %v632
  %v637 = vunpack.c.l.b16 %v562
  %v638 = vunpack.c.h.b16 %v562
  %v639 = vunpack.c.l.b16 %v563
  %v640 = vunpack.c.h.b16 %v563
  %v641 = vpack.c.b16 %v637, %v637
  %v642 = vpack.c.b16 %v638, %v638
  %v643 = vpack.c.b16 %v639, %v639
  %v644 = vpack.c.b16 %v640, %v640
  %v713 = vunpack.c.l.b16 %v564
  %v714 = vunpack.c.l.b16 %v565
  %v715 = vunpack.c.l.b16 %v566
  %v716 = vunpack.c.l.b16 %v567
  %v717 = vunpack.c.l.b16 %v568
  %v718 = vunpack.c.l.b16 %v569
  %v719 = vunpack.c.l.b16 %v570
  %v720 = vunpack.c.l.b16 %v571
  %v721 = vunpack.c.l.b16 %v572
  %v722 = vunpack.c.l.b16 %v573
  %v723 = vunpack.c.l.b16 %v574
  %v724 = vunpack.c.l.b16 %v575
  %v725 = vunpack.c.l.b16 %v576
  %v726 = vunpack.c.l.b16 %v577
  %v727 = vunpack.c.l.b16 %v578
  %v728 = vunpack.c.l.b16 %v579
  %v729 = vunpack.c.l.b16 %v580
  %v730 = vunpack.c.l.b16 %v581
  %v731 = vunpack.c.l.b16 %v582
  %v732 = vunpack.c.l.b16 %v583
  %v733 = vunpack.c.l.b16 %v584
  %v734 = vunpack.c.l.b16 %v585
  %v735 = vunpack.c.l.b16 %v586
  %v736 = vunpack.c.l.b16 %v587
  %v737 = vunpack.c.l.b16 %v588
  %v738 = vunpack.c.l.b16 %v589
  %v739 = vunpack.c.l.b16 %v590
  %v740 = vunpack.c.l.b16 %v591
  %v741 = vunpack.c.l.b16 %v592
  %v742 = vunpack.c.l.b16 %v593
  %v743 = vunpack.c.l.b16 %v594
  %v744 = vunpack.c.l.b16 %v595
  %v745 = vunpack.c.l.b16 %v596
  %v746 = vunpack.c.l.b16 %v597
  %v747 = vunpack.c.l.b16 %v598
  %v748 = vunpack.c.l.b16 %v599
  %v749 = vunpack.c.l.b16 %v600
  %v750 = vunpack.c.l.b16 %v601
  %v751 = vunpack.c.l.b16 %v602
  %v752 = vunpack.c.l.b16 %v603
  %v753 = vunpack.c.l.b16 %v604
  %v754 = vunpack.c.l.b16 %v605
  %v755 = vunpack.c.l.b16 %v606
  %v756 = vunpack.c.l.b16 %v607
  %v757 = vunpack.c.l.b16 %v608
  %v758 = vunpack.c.l.b16 %v609
  %v759 = vunpack.c.l.b16 %v610
  %v760 = vunpack.c.l.b16 %v611
  %v761 = vunpack.c.l.b16 %v612
  %v762 = vunpack.c.l.b16 %v613
  %v763 = vunpack.c.l.b16 %v614
  %v764 = vunpack.c.l.b16 %v615
  %v765 = vunpack.c.l.b16 %v616
  %v766 = vunpack.c.l.b16 %v617
  %v767 = vunpack.c.l.b16 %v618
  %v768 = vunpack.c.l.b16 %v619
  %v769 = vunpack.c.l.b16 %v620
  %v770 = vunpack.c.l.b16 %v621
  %v771 = vunpack.c.l.b16 %v622
  %v772 = vunpack.c.l.b16 %v623
  %v773 = vunpack.c.l.b16 %v624
  %v774 = vunpack.c.l.b16 %v625
  %v775 = vunpack.c.l.b16 %v626
  %v776 = vunpack.c.l.b16 %v627
  %v777 = vpack.c.b16 %v714, %v713
  %v778 = vpack.c.b16 %v716, %v715
  %v779 = vpack.c.b16 %v718, %v717
  %v780 = vpack.c.b16 %v720, %v719
  %v781 = vpack.c.b16 %v722, %v721
  %v782 = vpack.c.b16 %v724, %v723
  %v783 = vpack.c.b16 %v726, %v725
  %v784 = vpack.c.b16 %v728, %v727
  %v785 = vpack.c.b16 %v730, %v729
  %v786 = vpack.c.b16 %v732, %v731
  %v787 = vpack.c.b16 %v734, %v733
  %v788 = vpack.c.b16 %v736, %v735
  %v789 = vpack.c.b16 %v738, %v737
  %v790 = vpack.c.b16 %v740, %v739
  %v791 = vpack.c.b16 %v742, %v741
  %v792 = vpack.c.b16 %v744, %v743
  %v793 = vpack.c.b16 %v746, %v745
  %v794 = vpack.c.b16 %v748, %v747
  %v795 = vpack.c.b16 %v750, %v749
  %v796 = vpack.c.b16 %v752, %v751
  %v797 = vpack.c.b16 %v754, %v753
  %v798 = vpack.c.b16 %v756, %v755
  %v799 = vpack.c.b16 %v758, %v757
  %v800 = vpack.c.b16 %v760, %v759
  %v801 = vpack.c.b16 %v762, %v761
  %v802 = vpack.c.b16 %v764, %v763
  %v803 = vpack.c.b16 %v766, %v765
  %v804 = vpack.c.b16 %v768, %v767
  %v805 = vpack.c.b16 %v770, %v769
  %v806 = vpack.c.b16 %v772, %v771
  %v807 = vpack.c.b16 %v774, %v773
  %v808 = vpack.c.b16 %v776, %v775
  %841 = vmatprep.subr.bf16.mxu0 0
  %842 = vmatpush1.bf16.msra.mxu0 %v777
  %843 = vmatprep.subr.bf16.mxu0 0
  %844 = vmatpush1.bf16.msra.mxu0 %v778
  %845 = vmatprep.subr.bf16.mxu0 0
  %846 = vmatpush1.bf16.msra.mxu0 %v779
  %847 = vmatprep.subr.bf16.mxu0 0
  %848 = vmatpush1.bf16.msra.mxu0 %v780
  %849 = vmatprep.subr.bf16.mxu0 0
  %850 = vmatpush1.bf16.msra.mxu0 %v781
  %851 = vmatprep.subr.bf16.mxu0 0
  %852 = vmatpush1.bf16.msra.mxu0 %v782
  %853 = vmatprep.subr.bf16.mxu0 0
  %854 = vmatpush1.bf16.msra.mxu0 %v783
  %855 = vmatprep.subr.bf16.mxu0 0
  %856 = vmatpush1.bf16.msra.mxu0 %v784
  %857 = vmatprep.subr.bf16.mxu0 0
  %858 = vmatpush1.bf16.msra.mxu0 %v785
  %859 = vmatprep.subr.bf16.mxu0 0
  %860 = vmatpush1.bf16.msra.mxu0 %v786
  %861 = vmatprep.subr.bf16.mxu0 0
  %862 = vmatpush1.bf16.msra.mxu0 %v787
  %863 = vmatprep.subr.bf16.mxu0 0
  %864 = vmatpush1.bf16.msra.mxu0 %v788
  %865 = vmatprep.subr.bf16.mxu0 0
  %866 = vmatpush1.bf16.msra.mxu0 %v789
  %867 = vmatprep.subr.bf16.mxu0 0
  %868 = vmatpush1.bf16.msra.mxu0 %v790
  %869 = vmatprep.subr.bf16.mxu0 0
  %870 = vmatpush1.bf16.msra.mxu0 %v791
  %871 = vmatprep.subr.bf16.mxu0 0
  %872 = vmatpush1.bf16.msra.mxu0 %v792
  %873 = vmatprep.mubr.bf16.mxu0 %v642
  %874 = vmatmul.mubr.bf16.gmra.mrb[0].mxu0 %v641
  %v875 = vpop.f32.mrb[0].mxu0
  %v876 = vadd.f32 %v633, %v875
  %v877 = vpop.f32.mrb[0].mxu0
  %v878 = vpop.f32.mrb[0].mxu0
  %v879 = vpop.f32.mrb[0].mxu0
  %880 = vdwg.mxu0
  %881 = vmatprep.subr.bf16.mxu0 0
  %882 = vmatpush1.bf16.msra.mxu0 %v793
  %883 = vmatprep.subr.bf16.mxu0 0
  %884 = vmatpush1.bf16.msra.mxu0 %v794
  %885 = vmatprep.subr.bf16.mxu0 0
  %886 = vmatpush1.bf16.msra.mxu0 %v795
  %887 = vmatprep.subr.bf16.mxu0 0
  %888 = vmatpush1.bf16.msra.mxu0 %v796
  %889 = vmatprep.subr.bf16.mxu0 0
  %890 = vmatpush1.bf16.msra.mxu0 %v797
  %891 = vmatprep.subr.bf16.mxu0 0
  %892 = vmatpush1.bf16.msra.mxu0 %v798
  %893 = vmatprep.subr.bf16.mxu0 0
  %894 = vmatpush1.bf16.msra.mxu0 %v799
  %895 = vmatprep.subr.bf16.mxu0 0
  %896 = vmatpush1.bf16.msra.mxu0 %v800
  %897 = vmatprep.subr.bf16.mxu0 0
  %898 = vmatpush1.bf16.msra.mxu0 %v801
  %899 = vmatprep.subr.bf16.mxu0 0
  %900 = vmatpush1.bf16.msra.mxu0 %v802
  %901 = vmatprep.subr.bf16.mxu0 0
  %902 = vmatpush1.bf16.msra.mxu0 %v803
  %903 = vmatprep.subr.bf16.mxu0 0
  %904 = vmatpush1.bf16.msra.mxu0 %v804
  %905 = vmatprep.subr.bf16.mxu0 0
  %906 = vmatpush1.bf16.msra.mxu0 %v805
  %907 = vmatprep.subr.bf16.mxu0 0
  %908 = vmatpush1.bf16.msra.mxu0 %v806
  %909 = vmatprep.subr.bf16.mxu0 0
  %910 = vmatpush1.bf16.msra.mxu0 %v807
  %911 = vmatprep.subr.bf16.mxu0 0
  %912 = vmatpush1.bf16.msra.mxu0 %v808
  %913 = vmatprep.mubr.bf16.mxu0 %v644
  %914 = vmatmul.mubr.bf16.gmra.mrb[0].mxu0 %v643
  %v915 = vpop.f32.mrb[0].mxu0
  %v916 = vadd.f32 %v876, %v915
  %v917 = vpop.f32.mrb[0].mxu0
  %v918 = vpop.f32.mrb[0].mxu0
  %v919 = vpop.f32.mrb[0].mxu0
  %920 = vdwg.mxu0
  %v921 = vmax.f32 %v916, 0.0
  %v922 = vpack.c.bf16 %v921, %v921
  %vm923 = vcmask 519168
  %924 = vst.msk [vmem:[#allocation4] sm:$0xf] %vm923, %v922
  %v925 = vld [vmem:[#allocation4] sm:$0x1]
  %vm926 = vcmask 516096
  %vm927 = vsmask.f32 256
  %vm928 = vmand %vm926, %vm927
  %v929 = vld [vmem:[#allocation5] sm:$0x1]
  %v930 = vsel %vm928, %v925, %v929
  %931 = vst [vmem:[#allocation5] sm:$0x1] %v930
  %v932 = vld [vmem:[#allocation4] sm:$0x4]
  %v935 = vunpack.c.l.s4 1966171168
  %v936 = vunpack.c.0.s8 %v935
  %v937 = vlaneseq
  %v938 = vshrl.u32 %v937, 7
  %v939 = vsub.s32 %v936, %v938
  %v940 = vrot.slane %v932, %v939
  %v942 = vunpack.c.l.s4 1966171168
  %v943 = vunpack.c.0.s8 %v942
  %v944 = vlaneseq
  %v945 = vshrl.u32 %v944, 7
  %v946 = vsub.s32 %v943, %v945
  %v947 = vrot.slane %v940, %v946
  %v948 = vcombine.high %v947, %v947
  %v950 = vshll.u32 %v948, 16
  %vm953 = vsmask.f32 7938
  %vm954 = vmand %vm926, %vm953
  %v955 = vld [vmem:[#allocation5] sm:$0x1]
  %v956 = vsel %vm954, %v950, %v955
  %957 = vst [vmem:[#allocation5] sm:$0x1] %v956
  %v958 = vld [vmem:[#allocation4] sm:$0x1]
  %v961 = vunpack.c.l.s4 1966171168
  %v962 = vunpack.c.0.s8 %v961
  %v963 = vlaneseq
  %v964 = vshrl.u32 %v963, 7
  %v965 = vsub.s32 %v962, %v964
  %v966 = vrot.slane %v958, %v965
  %v968 = vunpack.c.l.s4 1966171168
  %v969 = vunpack.c.0.s8 %v968
  %v970 = vlaneseq
  %v971 = vshrl.u32 %v970, 7
  %v972 = vsub.s32 %v969, %v971
  %v973 = vrot.slane %v966, %v972
  %v975 = vshrl.u32 %v973, 16
  %v977 = vrot.slane %v975, 7
  %v978 = vrot.slane %v977, 1
  %979 = vrot.lane.b32.xlu0 %v978, 64
  %v980 = vpop.permute.xlu0 %979
  %vm982 = vcmask 1040896
  %vm983 = vmand %vm982, %vm927
  %v984 = vld [vmem:[#allocation5] sm:$0x1]
  %v985 = vsel %vm983, %v980, %v984
  %986 = vst [vmem:[#allocation5] sm:$0x1] %v985
  %v987 = vld [vmem:[#allocation4] sm:$0x4]
  %v990 = vunpack.c.l.s4 1966171168
  %v991 = vunpack.c.0.s8 %v990
  %v992 = vlaneseq
  %v993 = vshrl.u32 %v992, 7
  %v994 = vsub.s32 %v991, %v993
  %v995 = vrot.slane %v987, %v994
  %v997 = vunpack.c.l.s4 1966171168
  %v998 = vunpack.c.0.s8 %v997
  %v999 = vlaneseq
  %v1000 = vshrl.u32 %v999, 7
  %v1001 = vsub.s32 %v998, %v1000
  %v1002 = vrot.slane %v995, %v1001
  %v1003 = vcombine.high %v1002, %v1002
  %1004 = vrot.lane.b32.xlu0 %v1003, 64
  %v1005 = vpop.permute.xlu0 %1004
  %vm1007 = vmand %vm982, %vm953
  %v1008 = vld [vmem:[#allocation5] sm:$0x1]
  %v1009 = vsel %vm1007, %v1005, %v1008
  %1010 = vst [vmem:[#allocation5] sm:$0x1] %v1009
  %v1011 = vld [vmem:[#allocation4] sm:$0x2]
  %v1014 = vunpack.c.l.s4 1966171168
  %v1015 = vunpack.c.0.s8 %v1014
  %v1016 = vlaneseq
  %v1017 = vshrl.u32 %v1016, 7
  %v1018 = vsub.s32 %v1015, %v1017
  %v1019 = vrot.slane %v1011, %v1018
  %v1020 = vcombine.high %v1019, %v1019
  %v1022 = vunpack.c.l.s4 1966171168
  %v1023 = vunpack.c.0.s8 %v1022
  %v1024 = vlaneseq
  %v1025 = vshrl.u32 %v1024, 7
  %v1026 = vsub.s32 %v1023, %v1025
  %v1027 = vrot.slane %v1020, %v1026
  %v1029 = vld [vmem:[#allocation5 + $0x1] sm:$0x1]
  %v1030 = vsel %vm928, %v1027, %v1029
  %1031 = vst [vmem:[#allocation5 + $0x1] sm:$0x1] %v1030
  %v1032 = vld [vmem:[#allocation4] sm:$0x8]
  %v1035 = vunpack.c.l.s4 1966171168
  %v1036 = vunpack.c.0.s8 %v1035
  %v1037 = vlaneseq
  %v1038 = vshrl.u32 %v1037, 7
  %v1039 = vsub.s32 %v1036, %v1038
  %v1040 = vrot.slane %v1032, %v1039
  %v1041 = vcombine.high %v1040, %v1040
  %v1043 = vunpack.c.l.s4 1966171168
  %v1044 = vunpack.c.0.s8 %v1043
  %v1045 = vlaneseq
  %v1046 = vshrl.u32 %v1045, 7
  %v1047 = vsub.s32 %v1044, %v1046
  %v1048 = vrot.slane %v1041, %v1047
  %v1049 = vcombine.high %v1048, %v1048
  %v1051 = vshll.u32 %v1049, 16
  %v1054 = vld [vmem:[#allocation5 + $0x1] sm:$0x1]
  %v1055 = vsel %vm954, %v1051, %v1054
  %1056 = vst [vmem:[#allocation5 + $0x1] sm:$0x1] %v1055
  %v1057 = vld [vmem:[#allocation4] sm:$0x2]
  %v1060 = vunpack.c.l.s4 1966171168
  %v1061 = vunpack.c.0.s8 %v1060
  %v1062 = vlaneseq
  %v1063 = vshrl.u32 %v1062, 7
  %v1064 = vsub.s32 %v1061, %v1063
  %v1065 = vrot.slane %v1057, %v1064
  %v1066 = vcombine.high %v1065, %v1065
  %v1068 = vunpack.c.l.s4 1966171168
  %v1069 = vunpack.c.0.s8 %v1068
  %v1070 = vlaneseq
  %v1071 = vshrl.u32 %v1070, 7
  %v1072 = vsub.s32 %v1069, %v1071
  %v1073 = vrot.slane %v1066, %v1072
  %v1075 = vshrl.u32 %v1073, 16
  %v1077 = vrot.slane %v1075, 7
  %v1078 = vrot.slane %v1077, 1
  %1079 = vrot.lane.b32.xlu0 %v1078, 64
  %v1080 = vpop.permute.xlu0 %1079
  %v1082 = vld [vmem:[#allocation5 + $0x1] sm:$0x1]
  %v1083 = vsel %vm983, %v1080, %v1082
  %1084 = vst [vmem:[#allocation5 + $0x1] sm:$0x1] %v1083
  %v1085 = vld [vmem:[#allocation4] sm:$0x8]
  %v1088 = vunpack.c.l.s4 1966171168
  %v1089 = vunpack.c.0.s8 %v1088
  %v1090 = vlaneseq
  %v1091 = vshrl.u32 %v1090, 7
  %v1092 = vsub.s32 %v1089, %v1091
  %v1093 = vrot.slane %v1085, %v1092
  %v1094 = vcombine.high %v1093, %v1093
  %v1096 = vunpack.c.l.s4 1966171168
  %v1097 = vunpack.c.0.s8 %v1096
  %v1098 = vlaneseq
  %v1099 = vshrl.u32 %v1098, 7
  %v1100 = vsub.s32 %v1097, %v1099
  %v1101 = vrot.slane %v1094, %v1100
  %v1102 = vcombine.high %v1101, %v1101
  %1103 = vrot.lane.b32.xlu0 %v1102, 64
  %v1104 = vpop.permute.xlu0 %1103
  %v1106 = vld [vmem:[#allocation5 + $0x1] sm:$0x1]
  %v1107 = vsel %vm1007, %v1104, %v1106
  %1108 = vst [vmem:[#allocation5 + $0x1] sm:$0x1] %v1107
  %v1109 = vld [vmem:[#allocation5] sm:$0x3]
  %v1110 = vld [vmem:[%s5] sm:$0xf]
  %v1111 = vld [vmem:[%s5 + $0x4] sm:$0xf]
  %v1112 = vld [vmem:[%s5 + $0x8] sm:$0xf]
  %v1113 = vld [vmem:[%s5 + $0xc] sm:$0xf]
  %v1114 = vld [vmem:[%s5 + $0x10] sm:$0xf]
  %v1115 = vld [vmem:[%s5 + $0x14] sm:$0xf]
  %v1116 = vld [vmem:[%s5 + $0x18] sm:$0xf]
  %v1117 = vld [vmem:[%s5 + $0x1c] sm:$0xf]
  %v1118 = vld [vmem:[%s5 + $0x20] sm:$0xf]
  %v1119 = vld [vmem:[%s5 + $0x24] sm:$0xf]
  %v1120 = vld [vmem:[%s5 + $0x28] sm:$0xf]
  %v1121 = vld [vmem:[%s5 + $0x2c] sm:$0xf]
  %v1122 = vld [vmem:[%s5 + $0x30] sm:$0xf]
  %v1123 = vld [vmem:[%s5 + $0x34] sm:$0xf]
  %v1124 = vld [vmem:[%s5 + $0x38] sm:$0xf]
  %v1125 = vld [vmem:[%s5 + $0x3c] sm:$0xf]
  %v1126 = vld [vmem:[%s5 + $0x40] sm:$0xf]
  %v1127 = vld [vmem:[%s5 + $0x44] sm:$0xf]
  %v1128 = vld [vmem:[%s5 + $0x48] sm:$0xf]
  %v1129 = vld [vmem:[%s5 + $0x4c] sm:$0xf]
  %v1130 = vld [vmem:[%s5 + $0x50] sm:$0xf]
  %v1131 = vld [vmem:[%s5 + $0x54] sm:$0xf]
  %v1132 = vld [vmem:[%s5 + $0x58] sm:$0xf]
  %v1133 = vld [vmem:[%s5 + $0x5c] sm:$0xf]
  %v1134 = vld [vmem:[%s5 + $0x60] sm:$0xf]
  %v1135 = vld [vmem:[%s5 + $0x64] sm:$0xf]
  %v1136 = vld [vmem:[%s5 + $0x68] sm:$0xf]
  %v1137 = vld [vmem:[%s5 + $0x6c] sm:$0xf]
  %v1138 = vld [vmem:[%s5 + $0x70] sm:$0xf]
  %v1139 = vld [vmem:[%s5 + $0x74] sm:$0xf]
  %v1140 = vld [vmem:[%s5 + $0x78] sm:$0xf]
  %v1141 = vld [vmem:[%s5 + $0x7c] sm:$0xf]
  %v1142 = vld [vmem:[%s6] sm:$0x1]
  %v1144 = vlaneseq
  %v1145 = vshrl.u32 %v1144, 7
  %v1146 = vsub.s32 0, %v1145
  %v1147 = vrot.slane %v1142, %v1146
  %v1151 = vunpack.c.l.s4 1966171168
  %v1152 = vunpack.c.0.s8 %v1151
  %v1153 = vlaneseq
  %v1154 = vshrl.u32 %v1153, 7
  %v1155 = vsub.s32 %v1152, %v1154
  %v1156 = vrot.slane %v1109, %v1155
  %v1157 = vcombine.high %v1156, %v1156
  %v1159 = vunpack.c.l.s4 1966171168
  %v1160 = vunpack.c.0.s8 %v1159
  %v1161 = vlaneseq
  %v1162 = vshrl.u32 %v1161, 7
  %v1163 = vsub.s32 %v1160, %v1162
  %v1164 = vrot.slane %v1156, %v1163
  %v1166 = vunpack.c.l.s4 1966171168
  %v1167 = vunpack.c.0.s8 %v1166
  %v1168 = vlaneseq
  %v1169 = vshrl.u32 %v1168, 7
  %v1170 = vsub.s32 %v1167, %v1169
  %v1171 = vrot.slane %v1157, %v1170
  %v1206 = vunpack.c.l.b16 %v1110
  %v1207 = vunpack.c.l.b16 %v1111
  %v1208 = vunpack.c.l.b16 %v1112
  %v1209 = vunpack.c.l.b16 %v1113
  %v1210 = vunpack.c.l.b16 %v1114
  %v1211 = vunpack.c.l.b16 %v1115
  %v1212 = vunpack.c.l.b16 %v1116
  %v1213 = vunpack.c.l.b16 %v1117
  %v1214 = vunpack.c.l.b16 %v1118
  %v1215 = vunpack.c.l.b16 %v1119
  %v1216 = vunpack.c.l.b16 %v1120
  %v1217 = vunpack.c.l.b16 %v1121
  %v1218 = vunpack.c.l.b16 %v1122
  %v1219 = vunpack.c.l.b16 %v1123
  %v1220 = vunpack.c.l.b16 %v1124
  %v1221 = vunpack.c.l.b16 %v1125
  %v1222 = vunpack.c.l.b16 %v1126
  %v1223 = vunpack.c.l.b16 %v1127
  %v1224 = vunpack.c.l.b16 %v1128
  %v1225 = vunpack.c.l.b16 %v1129
  %v1226 = vunpack.c.l.b16 %v1130
  %v1227 = vunpack.c.l.b16 %v1131
  %v1228 = vunpack.c.l.b16 %v1132
  %v1229 = vunpack.c.l.b16 %v1133
  %v1230 = vunpack.c.l.b16 %v1134
  %v1231 = vunpack.c.l.b16 %v1135
  %v1232 = vunpack.c.l.b16 %v1136
  %v1233 = vunpack.c.l.b16 %v1137
  %v1234 = vunpack.c.l.b16 %v1138
  %v1235 = vunpack.c.l.b16 %v1139
  %v1236 = vunpack.c.l.b16 %v1140
  %v1237 = vunpack.c.l.b16 %v1141
  %v1238 = vpack.c.b16 %v1207, %v1206
  %v1239 = vpack.c.b16 %v1209, %v1208
  %v1240 = vpack.c.b16 %v1211, %v1210
  %v1241 = vpack.c.b16 %v1213, %v1212
  %v1242 = vpack.c.b16 %v1215, %v1214
  %v1243 = vpack.c.b16 %v1217, %v1216
  %v1244 = vpack.c.b16 %v1219, %v1218
  %v1245 = vpack.c.b16 %v1221, %v1220
  %v1246 = vpack.c.b16 %v1223, %v1222
  %v1247 = vpack.c.b16 %v1225, %v1224
  %v1248 = vpack.c.b16 %v1227, %v1226
  %v1249 = vpack.c.b16 %v1229, %v1228
  %v1250 = vpack.c.b16 %v1231, %v1230
  %v1251 = vpack.c.b16 %v1233, %v1232
  %v1252 = vpack.c.b16 %v1235, %v1234
  %v1253 = vpack.c.b16 %v1237, %v1236
  %1270 = vmatprep.subr.bf16.mxu0 0
  %1271 = vmatpush1.bf16.msra.mxu0 %v1238
  %1272 = vmatprep.subr.bf16.mxu0 0
  %1273 = vmatpush1.bf16.msra.mxu0 %v1239
  %1274 = vmatprep.subr.bf16.mxu0 0
  %1275 = vmatpush1.bf16.msra.mxu0 %v1240
  %1276 = vmatprep.subr.bf16.mxu0 0
  %1277 = vmatpush1.bf16.msra.mxu0 %v1241
  %1278 = vmatprep.subr.bf16.mxu0 0
  %1279 = vmatpush1.bf16.msra.mxu0 %v1242
  %1280 = vmatprep.subr.bf16.mxu0 0
  %1281 = vmatpush1.bf16.msra.mxu0 %v1243
  %1282 = vmatprep.subr.bf16.mxu0 0
  %1283 = vmatpush1.bf16.msra.mxu0 %v1244
  %1284 = vmatprep.subr.bf16.mxu0 0
  %1285 = vmatpush1.bf16.msra.mxu0 %v1245
  %1286 = vmatprep.subr.bf16.mxu0 0
  %1287 = vmatpush1.bf16.msra.mxu0 %v1246
  %1288 = vmatprep.subr.bf16.mxu0 0
  %1289 = vmatpush1.bf16.msra.mxu0 %v1247
  %1290 = vmatprep.subr.bf16.mxu0 0
  %1291 = vmatpush1.bf16.msra.mxu0 %v1248
  %1292 = vmatprep.subr.bf16.mxu0 0
  %1293 = vmatpush1.bf16.msra.mxu0 %v1249
  %1294 = vmatprep.subr.bf16.mxu0 0
  %1295 = vmatpush1.bf16.msra.mxu0 %v1250
  %1296 = vmatprep.subr.bf16.mxu0 0
  %1297 = vmatpush1.bf16.msra.mxu0 %v1251
  %1298 = vmatprep.subr.bf16.mxu0 0
  %1299 = vmatpush1.bf16.msra.mxu0 %v1252
  %1300 = vmatprep.subr.bf16.mxu0 0
  %1301 = vmatpush1.bf16.msra.mxu0 %v1253
  %1302 = vmatprep.mubr.bf16.mxu0 %v1171
  %1303 = vmatmul.mubr.bf16.gmra.mrb[0].mxu0 %v1164
  %v1304 = vpop.f32.mrb[0].mxu0
  %v1305 = vadd.f32 %v1147, %v1304
  %v1306 = vpop.f32.mrb[0].mxu0
  %v1307 = vpop.f32.mrb[0].mxu0
  %v1308 = vpop.f32.mrb[0].mxu0
  %1309 = vdwg.mxu0
  %v1310 = vmax.f32 %v1305, 0.0
  %v1311 = vpack.c.bf16 %v1310, %v1310
  %1312 = vst [vmem:[#allocation6] sm:$0x1] %v1311
  %v1313 = vld [vmem:[#allocation6] sm:$0x1]
  %v1314 = vld [vmem:[%s7] sm:$0xff]
  %v1315 = vld [vmem:[%s7 + $0x8] sm:$0xff]
  %v1316 = vld [vmem:[%s7 + $0x10] sm:$0xff]
  %v1317 = vld [vmem:[%s7 + $0x18] sm:$0xff]
  %v1318 = vld [vmem:[%s7 + $0x20] sm:$0xff]
  %v1319 = vld [vmem:[%s7 + $0x28] sm:$0xff]
  %v1320 = vld [vmem:[%s7 + $0x30] sm:$0xff]
  %v1321 = vld [vmem:[%s7 + $0x38] sm:$0xff]
  %v1322 = vld [vmem:[%s7 + $0x40] sm:$0xff]
  %v1323 = vld [vmem:[%s7 + $0x48] sm:$0xff]
  %v1324 = vld [vmem:[%s7 + $0x50] sm:$0xff]
  %v1325 = vld [vmem:[%s7 + $0x58] sm:$0xff]
  %v1326 = vld [vmem:[%s7 + $0x60] sm:$0xff]
  %v1327 = vld [vmem:[%s7 + $0x68] sm:$0xff]
  %v1328 = vld [vmem:[%s7 + $0x70] sm:$0xff]
  %v1329 = vld [vmem:[%s7 + $0x78] sm:$0xff]
  %v1330 = vld [vmem:[%s7 + $0x80] sm:$0xff]
  %v1331 = vld [vmem:[%s7 + $0x88] sm:$0xff]
  %v1332 = vld [vmem:[%s7 + $0x90] sm:$0xff]
  %v1333 = vld [vmem:[%s7 + $0x98] sm:$0xff]
  %v1334 = vld [vmem:[%s7 + $0xa0] sm:$0xff]
  %v1335 = vld [vmem:[%s7 + $0xa8] sm:$0xff]
  %v1336 = vld [vmem:[%s7 + $0xb0] sm:$0xff]
  %v1337 = vld [vmem:[%s7 + $0xb8] sm:$0xff]
  %v1338 = vld [vmem:[%s7 + $0xc0] sm:$0xff]
  %v1339 = vld [vmem:[%s7 + $0xc8] sm:$0xff]
  %v1340 = vld [vmem:[%s7 + $0xd0] sm:$0xff]
  %v1341 = vld [vmem:[%s7 + $0xd8] sm:$0xff]
  %v1342 = vld [vmem:[%s7 + $0xe0] sm:$0xff]
  %v1343 = vld [vmem:[%s7 + $0xe8] sm:$0xff]
  %v1344 = vld [vmem:[%s7 + $0xf0] sm:$0xff]
  %v1345 = vld [vmem:[%s7 + $0xf8] sm:$0xff]
  %v1346 = vld [vmem:[%s7 + $0x100] sm:$0xff]
  %v1347 = vld [vmem:[%s7 + $0x108] sm:$0xff]
  %v1348 = vld [vmem:[%s7 + $0x110] sm:$0xff]
  %v1349 = vld [vmem:[%s7 + $0x118] sm:$0xff]
  %v1350 = vld [vmem:[%s7 + $0x120] sm:$0xff]
  %v1351 = vld [vmem:[%s7 + $0x128] sm:$0xff]
  %v1352 = vld [vmem:[%s7 + $0x130] sm:$0xff]
  %v1353 = vld [vmem:[%s7 + $0x138] sm:$0xff]
  %v1354 = vld [vmem:[%s7 + $0x140] sm:$0xff]
  %v1355 = vld [vmem:[%s7 + $0x148] sm:$0xff]
  %v1356 = vld [vmem:[%s7 + $0x150] sm:$0xff]
  %v1357 = vld [vmem:[%s7 + $0x158] sm:$0xff]
  %v1358 = vld [vmem:[%s7 + $0x160] sm:$0xff]
  %v1359 = vld [vmem:[%s7 + $0x168] sm:$0xff]
  %v1360 = vld [vmem:[%s7 + $0x170] sm:$0xff]
  %v1361 = vld [vmem:[%s7 + $0x178] sm:$0xff]
  %v1362 = vld [vmem:[%s7 + $0x180] sm:$0xff]
  %v1363 = vld [vmem:[%s7 + $0x188] sm:$0xff]
  %v1364 = vld [vmem:[%s7 + $0x190] sm:$0xff]
  %v1365 = vld [vmem:[%s7 + $0x198] sm:$0xff]
  %v1366 = vld [vmem:[%s7 + $0x1a0] sm:$0xff]
  %v1367 = vld [vmem:[%s7 + $0x1a8] sm:$0xff]
  %v1368 = vld [vmem:[%s7 + $0x1b0] sm:$0xff]
  %v1369 = vld [vmem:[%s7 + $0x1b8] sm:$0xff]
  %v1370 = vld [vmem:[%s7 + $0x1c0] sm:$0xff]
  %v1371 = vld [vmem:[%s7 + $0x1c8] sm:$0xff]
  %v1372 = vld [vmem:[%s7 + $0x1d0] sm:$0xff]
  %v1373 = vld [vmem:[%s7 + $0x1d8] sm:$0xff]
  %v1374 = vld [vmem:[%s7 + $0x1e0] sm:$0xff]
  %v1375 = vld [vmem:[%s7 + $0x1e8] sm:$0xff]
  %v1376 = vld [vmem:[%s7 + $0x1f0] sm:$0xff]
  %v1377 = vld [vmem:[%s7 + $0x1f8] sm:$0xff]
  %v1378 = vld [vmem:[%s8] sm:$0xff]
  %v1380 = vlaneseq
  %v1381 = vshrl.u32 %v1380, 7
  %v1382 = vsub.s32 0, %v1381
  %v1383 = vrot.slane %v1378, %v1382
  %v1384 = vlaneseq
  %v1385 = vshrl.u32 %v1384, 7
  %v1386 = vsub.s32 1, %v1385
  %v1387 = vrot.slane %v1378, %v1386
  %v1388 = vlaneseq
  %v1389 = vshrl.u32 %v1388, 7
  %v1390 = vsub.s32 2, %v1389
  %v1391 = vrot.slane %v1378, %v1390
  %v1392 = vlaneseq
  %v1393 = vshrl.u32 %v1392, 7
  %v1394 = vsub.s32 3, %v1393
  %v1395 = vrot.slane %v1378, %v1394
  %v1396 = vlaneseq
  %v1397 = vshrl.u32 %v1396, 7
  %v1398 = vsub.s32 4, %v1397
  %v1399 = vrot.slane %v1378, %v1398
  %v1400 = vlaneseq
  %v1401 = vshrl.u32 %v1400, 7
  %v1402 = vsub.s32 5, %v1401
  %v1403 = vrot.slane %v1378, %v1402
  %v1404 = vlaneseq
  %v1405 = vshrl.u32 %v1404, 7
  %v1406 = vsub.s32 6, %v1405
  %v1407 = vrot.slane %v1378, %v1406
  %v1408 = vlaneseq
  %v1409 = vshrl.u32 %v1408, 7
  %v1410 = vsub.s32 7, %v1409
  %v1411 = vrot.slane %v1378, %v1410
  %v1484 = vunpack.c.l.b16 %v1314
  %v1485 = vunpack.c.h.b16 %v1314
  %v1486 = vunpack.c.l.b16 %v1315
  %v1487 = vunpack.c.h.b16 %v1315
  %v1488 = vunpack.c.l.b16 %v1316
  %v1489 = vunpack.c.h.b16 %v1316
  %v1490 = vunpack.c.l.b16 %v1317
  %v1491 = vunpack.c.h.b16 %v1317
  %v1492 = vunpack.c.l.b16 %v1318
  %v1493 = vunpack.c.h.b16 %v1318
  %v1494 = vunpack.c.l.b16 %v1319
  %v1495 = vunpack.c.h.b16 %v1319
  %v1496 = vunpack.c.l.b16 %v1320
  %v1497 = vunpack.c.h.b16 %v1320
  %v1498 = vunpack.c.l.b16 %v1321
  %v1499 = vunpack.c.h.b16 %v1321
  %v1500 = vunpack.c.l.b16 %v1322
  %v1501 = vunpack.c.h.b16 %v1322
  %v1502 = vunpack.c.l.b16 %v1323
  %v1503 = vunpack.c.h.b16 %v1323
  %v1504 = vunpack.c.l.b16 %v1324
  %v1505 = vunpack.c.h.b16 %v1324
  %v1506 = vunpack.c.l.b16 %v1325
  %v1507 = vunpack.c.h.b16 %v1325
  %v1508 = vunpack.c.l.b16 %v1326
  %v1509 = vunpack.c.h.b16 %v1326
  %v1510 = vunpack.c.l.b16 %v1327
  %v1511 = vunpack.c.h.b16 %v1327
  %v1512 = vunpack.c.l.b16 %v1328
  %v1513 = vunpack.c.h.b16 %v1328
  %v1514 = vunpack.c.l.b16 %v1329
  %v1515 = vunpack.c.h.b16 %v1329
  %v1516 = vunpack.c.l.b16 %v1330
  %v1517 = vunpack.c.h.b16 %v1330
  %v1518 = vunpack.c.l.b16 %v1331
  %v1519 = vunpack.c.h.b16 %v1331
  %v1520 = vunpack.c.l.b16 %v1332
  %v1521 = vunpack.c.h.b16 %v1332
  %v1522 = vunpack.c.l.b16 %v1333
  %v1523 = vunpack.c.h.b16 %v1333
  %v1524 = vunpack.c.l.b16 %v1334
  %v1525 = vunpack.c.h.b16 %v1334
  %v1526 = vunpack.c.l.b16 %v1335
  %v1527 = vunpack.c.h.b16 %v1335
  %v1528 = vunpack.c.l.b16 %v1336
  %v1529 = vunpack.c.h.b16 %v1336
  %v1530 = vunpack.c.l.b16 %v1337
  %v1531 = vunpack.c.h.b16 %v1337
  %v1532 = vunpack.c.l.b16 %v1338
  %v1533 = vunpack.c.h.b16 %v1338
  %v1534 = vunpack.c.l.b16 %v1339
  %v1535 = vunpack.c.h.b16 %v1339
  %v1536 = vunpack.c.l.b16 %v1340
  %v1537 = vunpack.c.h.b16 %v1340
  %v1538 = vunpack.c.l.b16 %v1341
  %v1539 = vunpack.c.h.b16 %v1341
  %v1540 = vunpack.c.l.b16 %v1342
  %v1541 = vunpack.c.h.b16 %v1342
  %v1542 = vunpack.c.l.b16 %v1343
  %v1543 = vunpack.c.h.b16 %v1343
  %v1544 = vunpack.c.l.b16 %v1344
  %v1545 = vunpack.c.h.b16 %v1344
  %v1546 = vunpack.c.l.b16 %v1345
  %v1547 = vunpack.c.h.b16 %v1345
  %v1548 = vunpack.c.l.b16 %v1346
  %v1549 = vunpack.c.h.b16 %v1346
  %v1550 = vunpack.c.l.b16 %v1347
  %v1551 = vunpack.c.h.b16 %v1347
  %v1552 = vunpack.c.l.b16 %v1348
  %v1553 = vunpack.c.h.b16 %v1348
  %v1554 = vunpack.c.l.b16 %v1349
  %v1555 = vunpack.c.h.b16 %v1349
  %v1556 = vunpack.c.l.b16 %v1350
  %v1557 = vunpack.c.h.b16 %v1350
  %v1558 = vunpack.c.l.b16 %v1351
  %v1559 = vunpack.c.h.b16 %v1351
  %v1560 = vunpack.c.l.b16 %v1352
  %v1561 = vunpack.c.h.b16 %v1352
  %v1562 = vunpack.c.l.b16 %v1353
  %v1563 = vunpack.c.h.b16 %v1353
  %v1564 = vunpack.c.l.b16 %v1354
  %v1565 = vunpack.c.h.b16 %v1354
  %v1566 = vunpack.c.l.b16 %v1355
  %v1567 = vunpack.c.h.b16 %v1355
  %v1568 = vunpack.c.l.b16 %v1356
  %v1569 = vunpack.c.h.b16 %v1356
  %v1570 = vunpack.c.l.b16 %v1357
  %v1571 = vunpack.c.h.b16 %v1357
  %v1572 = vunpack.c.l.b16 %v1358
  %v1573 = vunpack.c.h.b16 %v1358
  %v1574 = vunpack.c.l.b16 %v1359
  %v1575 = vunpack.c.h.b16 %v1359
  %v1576 = vunpack.c.l.b16 %v1360
  %v1577 = vunpack.c.h.b16 %v1360
  %v1578 = vunpack.c.l.b16 %v1361
  %v1579 = vunpack.c.h.b16 %v1361
  %v1580 = vunpack.c.l.b16 %v1362
  %v1581 = vunpack.c.h.b16 %v1362
  %v1582 = vunpack.c.l.b16 %v1363
  %v1583 = vunpack.c.h.b16 %v1363
  %v1584 = vunpack.c.l.b16 %v1364
  %v1585 = vunpack.c.h.b16 %v1364
  %v1586 = vunpack.c.l.b16 %v1365
  %v1587 = vunpack.c.h.b16 %v1365
  %v1588 = vunpack.c.l.b16 %v1366
  %v1589 = vunpack.c.h.b16 %v1366
  %v1590 = vunpack.c.l.b16 %v1367
  %v1591 = vunpack.c.h.b16 %v1367
  %v1592 = vunpack.c.l.b16 %v1368
  %v1593 = vunpack.c.h.b16 %v1368
  %v1594 = vunpack.c.l.b16 %v1369
  %v1595 = vunpack.c.h.b16 %v1369
  %v1596 = vunpack.c.l.b16 %v1370
  %v1597 = vunpack.c.h.b16 %v1370
  %v1598 = vunpack.c.l.b16 %v1371
  %v1599 = vunpack.c.h.b16 %v1371
  %v1600 = vunpack.c.l.b16 %v1372
  %v1601 = vunpack.c.h.b16 %v1372
  %v1602 = vunpack.c.l.b16 %v1373
  %v1603 = vunpack.c.h.b16 %v1373
  %v1604 = vunpack.c.l.b16 %v1374
  %v1605 = vunpack.c.h.b16 %v1374
  %v1606 = vunpack.c.l.b16 %v1375
  %v1607 = vunpack.c.h.b16 %v1375
  %v1608 = vunpack.c.l.b16 %v1376
  %v1609 = vunpack.c.h.b16 %v1376
  %v1610 = vunpack.c.l.b16 %v1377
  %v1611 = vunpack.c.h.b16 %v1377
  %v1612 = vpack.c.b16 %v1492, %v1484
  %v1613 = vpack.c.b16 %v1493, %v1485
  %v1614 = vpack.c.b16 %v1494, %v1486
  %v1615 = vpack.c.b16 %v1495, %v1487
  %v1616 = vpack.c.b16 %v1496, %v1488
  %v1617 = vpack.c.b16 %v1497, %v1489
  %v1618 = vpack.c.b16 %v1498, %v1490
  %v1619 = vpack.c.b16 %v1499, %v1491
  %v1620 = vpack.c.b16 %v1508, %v1500
  %v1621 = vpack.c.b16 %v1509, %v1501
  %v1622 = vpack.c.b16 %v1510, %v1502
  %v1623 = vpack.c.b16 %v1511, %v1503
  %v1624 = vpack.c.b16 %v1512, %v1504
  %v1625 = vpack.c.b16 %v1513, %v1505
  %v1626 = vpack.c.b16 %v1514, %v1506
  %v1627 = vpack.c.b16 %v1515, %v1507
  %v1628 = vpack.c.b16 %v1524, %v1516
  %v1629 = vpack.c.b16 %v1525, %v1517
  %v1630 = vpack.c.b16 %v1526, %v1518
  %v1631 = vpack.c.b16 %v1527, %v1519
  %v1632 = vpack.c.b16 %v1528, %v1520
  %v1633 = vpack.c.b16 %v1529, %v1521
  %v1634 = vpack.c.b16 %v1530, %v1522
  %v1635 = vpack.c.b16 %v1531, %v1523
  %v1636 = vpack.c.b16 %v1540, %v1532
  %v1637 = vpack.c.b16 %v1541, %v1533
  %v1638 = vpack.c.b16 %v1542, %v1534
  %v1639 = vpack.c.b16 %v1543, %v1535
  %v1640 = vpack.c.b16 %v1544, %v1536
  %v1641 = vpack.c.b16 %v1545, %v1537
  %v1642 = vpack.c.b16 %v1546, %v1538
  %v1643 = vpack.c.b16 %v1547, %v1539
  %v1644 = vpack.c.b16 %v1556, %v1548
  %v1645 = vpack.c.b16 %v1557, %v1549
  %v1646 = vpack.c.b16 %v1558, %v1550
  %v1647 = vpack.c.b16 %v1559, %v1551
  %v1648 = vpack.c.b16 %v1560, %v1552
  %v1649 = vpack.c.b16 %v1561, %v1553
  %v1650 = vpack.c.b16 %v1562, %v1554
  %v1651 = vpack.c.b16 %v1563, %v1555
  %v1652 = vpack.c.b16 %v1572, %v1564
  %v1653 = vpack.c.b16 %v1573, %v1565
  %v1654 = vpack.c.b16 %v1574, %v1566
  %v1655 = vpack.c.b16 %v1575, %v1567
  %v1656 = vpack.c.b16 %v1576, %v1568
  %v1657 = vpack.c.b16 %v1577, %v1569
  %v1658 = vpack.c.b16 %v1578, %v1570
  %v1659 = vpack.c.b16 %v1579, %v1571
  %v1660 = vpack.c.b16 %v1588, %v1580
  %v1661 = vpack.c.b16 %v1589, %v1581
  %v1662 = vpack.c.b16 %v1590, %v1582
  %v1663 = vpack.c.b16 %v1591, %v1583
  %v1664 = vpack.c.b16 %v1592, %v1584
  %v1665 = vpack.c.b16 %v1593, %v1585
  %v1666 = vpack.c.b16 %v1594, %v1586
  %v1667 = vpack.c.b16 %v1595, %v1587
  %v1668 = vpack.c.b16 %v1604, %v1596
  %v1669 = vpack.c.b16 %v1605, %v1597
  %v1670 = vpack.c.b16 %v1606, %v1598
  %v1671 = vpack.c.b16 %v1607, %v1599
  %v1672 = vpack.c.b16 %v1608, %v1600
  %v1673 = vpack.c.b16 %v1609, %v1601
  %v1674 = vpack.c.b16 %v1610, %v1602
  %v1675 = vpack.c.b16 %v1611, %v1603
  %1740 = vmatprep.subr.bf16.mxu0 %v1613
  %1741 = vmatpush1.bf16.msra.mxu0 %v1612
  %1742 = vmatprep.subr.bf16.mxu0 %v1621
  %1743 = vmatpush1.bf16.msra.mxu0 %v1620
  %1744 = vmatprep.subr.bf16.mxu0 %v1629
  %1745 = vmatpush1.bf16.msra.mxu0 %v1628
  %1746 = vmatprep.subr.bf16.mxu0 %v1637
  %1747 = vmatpush1.bf16.msra.mxu0 %v1636
  %1748 = vmatprep.subr.bf16.mxu0 %v1645
  %1749 = vmatpush1.bf16.msra.mxu0 %v1644
  %1750 = vmatprep.subr.bf16.mxu0 %v1653
  %1751 = vmatpush1.bf16.msra.mxu0 %v1652
  %1752 = vmatprep.subr.bf16.mxu0 %v1661
  %1753 = vmatpush1.bf16.msra.mxu0 %v1660
  %1754 = vmatprep.subr.bf16.mxu0 %v1669
  %1755 = vmatpush1.bf16.msra.mxu0 %v1668
  %1756 = vmatprep.subr.bf16.mxu0 0
  %1757 = vmatpush1.bf16.msra.mxu0 0
  %1758 = vmatprep.subr.bf16.mxu0 0
  %1759 = vmatpush1.bf16.msra.mxu0 0
  %1760 = vmatprep.subr.bf16.mxu0 0
  %1761 = vmatpush1.bf16.msra.mxu0 0
  %1762 = vmatprep.subr.bf16.mxu0 0
  %1763 = vmatpush1.bf16.msra.mxu0 0
  %1764 = vmatprep.subr.bf16.mxu0 0
  %1765 = vmatpush1.bf16.msra.mxu0 0
  %1766 = vmatprep.subr.bf16.mxu0 0
  %1767 = vmatpush1.bf16.msra.mxu0 0
  %1768 = vmatprep.subr.bf16.mxu0 0
  %1769 = vmatpush1.bf16.msra.mxu0 0
  %1770 = vmatprep.subr.bf16.mxu0 0
  %1771 = vmatpush1.bf16.msra.mxu0 0
  %1772 = vmatprep.mubr.bf16.mxu0 0
  %1773 = vmatmul.mubr.bf16.gmra.mrb[0].mxu0 %v1313
  %v1774 = vpop.f32.mrb[0].mxu0
  %v1775 = vadd.f32 %v1383, %v1774
  %v1776 = vpop.f32.mrb[0].mxu0
  %v1777 = vadd.f32 %v1387, %v1776
  %v1778 = vpop.f32.mrb[0].mxu0
  %v1779 = vpop.f32.mrb[0].mxu0
  %1780 = vdwg.mxu0
  %1781 = vmatprep.subr.bf16.mxu0 %v1615
  %1782 = vmatpush1.bf16.msra.mxu0 %v1614
  %1783 = vmatprep.subr.bf16.mxu0 %v1623
  %1784 = vmatpush1.bf16.msra.mxu0 %v1622
  %1785 = vmatprep.subr.bf16.mxu0 %v1631
  %1786 = vmatpush1.bf16.msra.mxu0 %v1630
  %1787 = vmatprep.subr.bf16.mxu0 %v1639
  %1788 = vmatpush1.bf16.msra.mxu0 %v1638
  %1789 = vmatprep.subr.bf16.mxu0 %v1647
  %1790 = vmatpush1.bf16.msra.mxu0 %v1646
  %1791 = vmatprep.subr.bf16.mxu0 %v1655
  %1792 = vmatpush1.bf16.msra.mxu0 %v1654
  %1793 = vmatprep.subr.bf16.mxu0 %v1663
  %1794 = vmatpush1.bf16.msra.mxu0 %v1662
  %1795 = vmatprep.subr.bf16.mxu0 %v1671
  %1796 = vmatpush1.bf16.msra.mxu0 %v1670
  %1797 = vmatprep.subr.bf16.mxu0 0
  %1798 = vmatpush1.bf16.msra.mxu0 0
  %1799 = vmatprep.subr.bf16.mxu0 0
  %1800 = vmatpush1.bf16.msra.mxu0 0
  %1801 = vmatprep.subr.bf16.mxu0 0
  %1802 = vmatpush1.bf16.msra.mxu0 0
  %1803 = vmatprep.subr.bf16.mxu0 0
  %1804 = vmatpush1.bf16.msra.mxu0 0
  %1805 = vmatprep.subr.bf16.mxu0 0
  %1806 = vmatpush1.bf16.msra.mxu0 0
  %1807 = vmatprep.subr.bf16.mxu0 0
  %1808 = vmatpush1.bf16.msra.mxu0 0
  %1809 = vmatprep.subr.bf16.mxu0 0
  %1810 = vmatpush1.bf16.msra.mxu0 0
  %1811 = vmatprep.subr.bf16.mxu0 0
  %1812 = vmatpush1.bf16.msra.mxu0 0
  %1813 = vmatprep.mubr.bf16.mxu0 0
  %1814 = vmatmul.mubr.bf16.gmra.mrb[0].mxu0 %v1313
  %v1815 = vpop.f32.mrb[0].mxu0
  %v1816 = vadd.f32 %v1391, %v1815
  %v1817 = vpop.f32.mrb[0].mxu0
  %v1818 = vadd.f32 %v1395, %v1817
  %v1819 = vpop.f32.mrb[0].mxu0
  %v1820 = vpop.f32.mrb[0].mxu0
  %1821 = vdwg.mxu0
  %1822 = vmatprep.subr.bf16.mxu0 %v1617
  %1823 = vmatpush1.bf16.msra.mxu0 %v1616
  %1824 = vmatprep.subr.bf16.mxu0 %v1625
  %1825 = vmatpush1.bf16.msra.mxu0 %v1624
  %1826 = vmatprep.subr.bf16.mxu0 %v1633
  %1827 = vmatpush1.bf16.msra.mxu0 %v1632
  %1828 = vmatprep.subr.bf16.mxu0 %v1641
  %1829 = vmatpush1.bf16.msra.mxu0 %v1640
  %1830 = vmatprep.subr.bf16.mxu0 %v1649
  %1831 = vmatpush1.bf16.msra.mxu0 %v1648
  %1832 = vmatprep.subr.bf16.mxu0 %v1657
  %1833 = vmatpush1.bf16.msra.mxu0 %v1656
  %1834 = vmatprep.subr.bf16.mxu0 %v1665
  %1835 = vmatpush1.bf16.msra.mxu0 %v1664
  %1836 = vmatprep.subr.bf16.mxu0 %v1673
  %1837 = vmatpush1.bf16.msra.mxu0 %v1672
  %1838 = vmatprep.subr.bf16.mxu0 0
  %1839 = vmatpush1.bf16.msra.mxu0 0
  %1840 = vmatprep.subr.bf16.mxu0 0
  %1841 = vmatpush1.bf16.msra.mxu0 0
  %1842 = vmatprep.subr.bf16.mxu0 0
  %1843 = vmatpush1.bf16.msra.mxu0 0
  %1844 = vmatprep.subr.bf16.mxu0 0
  %1845 = vmatpush1.bf16.msra.mxu0 0
  %1846 = vmatprep.subr.bf16.mxu0 0
  %1847 = vmatpush1.bf16.msra.mxu0 0
  %1848 = vmatprep.subr.bf16.mxu0 0
  %1849 = vmatpush1.bf16.msra.mxu0 0
  %1850 = vmatprep.subr.bf16.mxu0 0
  %1851 = vmatpush1.bf16.msra.mxu0 0
  %1852 = vmatprep.subr.bf16.mxu0 0
  %1853 = vmatpush1.bf16.msra.mxu0 0
  %1854 = vmatprep.mubr.bf16.mxu0 0
  %1855 = vmatmul.mubr.bf16.gmra.mrb[0].mxu0 %v1313
  %v1856 = vpop.f32.mrb[0].mxu0
  %v1857 = vadd.f32 %v1399, %v1856
  %v1858 = vpop.f32.mrb[0].mxu0
  %v1859 = vadd.f32 %v1403, %v1858
  %v1860 = vpop.f32.mrb[0].mxu0
  %v1861 = vpop.f32.mrb[0].mxu0
  %1862 = vdwg.mxu0
  %1863 = vmatprep.subr.bf16.mxu0 %v1619
  %1864 = vmatpush1.bf16.msra.mxu0 %v1618
  %1865 = vmatprep.subr.bf16.mxu0 %v1627
  %1866 = vmatpush1.bf16.msra.mxu0 %v1626
  %1867 = vmatprep.subr.bf16.mxu0 %v1635
  %1868 = vmatpush1.bf16.msra.mxu0 %v1634
  %1869 = vmatprep.subr.bf16.mxu0 %v1643
  %1870 = vmatpush1.bf16.msra.mxu0 %v1642
  %1871 = vmatprep.subr.bf16.mxu0 %v1651
  %1872 = vmatpush1.bf16.msra.mxu0 %v1650
  %1873 = vmatprep.subr.bf16.mxu0 %v1659
  %1874 = vmatpush1.bf16.msra.mxu0 %v1658
  %1875 = vmatprep.subr.bf16.mxu0 %v1667
  %1876 = vmatpush1.bf16.msra.mxu0 %v1666
  %1877 = vmatprep.subr.bf16.mxu0 %v1675
  %1878 = vmatpush1.bf16.msra.mxu0 %v1674
  %1879 = vmatprep.subr.bf16.mxu0 0
  %1880 = vmatpush1.bf16.msra.mxu0 0
  %1881 = vmatprep.subr.bf16.mxu0 0
  %1882 = vmatpush1.bf16.msra.mxu0 0
  %1883 = vmatprep.subr.bf16.mxu0 0
  %1884 = vmatpush1.bf16.msra.mxu0 0
  %1885 = vmatprep.subr.bf16.mxu0 0
  %1886 = vmatpush1.bf16.msra.mxu0 0
  %1887 = vmatprep.subr.bf16.mxu0 0
  %1888 = vmatpush1.bf16.msra.mxu0 0
  %1889 = vmatprep.subr.bf16.mxu0 0
  %1890 = vmatpush1.bf16.msra.mxu0 0
  %1891 = vmatprep.subr.bf16.mxu0 0
  %1892 = vmatpush1.bf16.msra.mxu0 0
  %1893 = vmatprep.subr.bf16.mxu0 0
  %1894 = vmatpush1.bf16.msra.mxu0 0
  %1895 = vmatprep.mubr.bf16.mxu0 0
  %1896 = vmatmul.mubr.bf16.gmra.mrb[0].mxu0 %v1313
  %v1897 = vpop.f32.mrb[0].mxu0
  %v1898 = vadd.f32 %v1407, %v1897
  %v1899 = vpop.f32.mrb[0].mxu0
  %v1900 = vadd.f32 %v1411, %v1899
  %v1901 = vpop.f32.mrb[0].mxu0
  %v1902 = vpop.f32.mrb[0].mxu0
  %1903 = vdwg.mxu0
  %v1904 = vmax.f32 %v1775, 0.0
  %v1905 = vmax.f32 %v1777, 0.0
  %v1906 = vmax.f32 %v1816, 0.0
  %v1907 = vmax.f32 %v1818, 0.0
  %v1908 = vmax.f32 %v1857, 0.0
  %v1909 = vmax.f32 %v1859, 0.0
  %v1910 = vmax.f32 %v1898, 0.0
  %v1911 = vmax.f32 %v1900, 0.0
  %v1912 = vpack.c.bf16 %v1904, %v1904
  %v1913 = vpack.c.bf16 %v1905, %v1905
  %v1914 = vpack.c.bf16 %v1906, %v1906
  %v1915 = vpack.c.bf16 %v1907, %v1907
  %v1916 = vpack.c.bf16 %v1908, %v1908
  %v1917 = vpack.c.bf16 %v1909, %v1909
  %v1918 = vpack.c.bf16 %v1910, %v1910
  %v1919 = vpack.c.bf16 %v1911, %v1911
  %v1920 = vld [vmem:[%s9] sm:$0xf]
  %v1921 = vld [vmem:[%s9 + $0x4] sm:$0xf]
  %v1922 = vld [vmem:[%s9 + $0x8] sm:$0xf]
  %v1923 = vld [vmem:[%s9 + $0xc] sm:$0xf]
  %v1924 = vld [vmem:[%s9 + $0x10] sm:$0xf]
  %v1925 = vld [vmem:[%s9 + $0x14] sm:$0xf]
  %v1926 = vld [vmem:[%s9 + $0x18] sm:$0xf]
  %v1927 = vld [vmem:[%s9 + $0x1c] sm:$0xf]
  %v1928 = vld [vmem:[%s9 + $0x20] sm:$0xf]
  %v1929 = vld [vmem:[%s9 + $0x24] sm:$0xf]
  %v1930 = vld [vmem:[%s9 + $0x28] sm:$0xf]
  %v1931 = vld [vmem:[%s9 + $0x2c] sm:$0xf]
  %v1932 = vld [vmem:[%s9 + $0x30] sm:$0xf]
  %v1933 = vld [vmem:[%s9 + $0x34] sm:$0xf]
  %v1934 = vld [vmem:[%s9 + $0x38] sm:$0xf]
  %v1935 = vld [vmem:[%s9 + $0x3c] sm:$0xf]
  %v1936 = vld [vmem:[%s9 + $0x40] sm:$0xf]
  %v1937 = vld [vmem:[%s9 + $0x44] sm:$0xf]
  %v1938 = vld [vmem:[%s9 + $0x48] sm:$0xf]
  %v1939 = vld [vmem:[%s9 + $0x4c] sm:$0xf]
  %v1940 = vld [vmem:[%s9 + $0x50] sm:$0xf]
  %v1941 = vld [vmem:[%s9 + $0x54] sm:$0xf]
  %v1942 = vld [vmem:[%s9 + $0x58] sm:$0xf]
  %v1943 = vld [vmem:[%s9 + $0x5c] sm:$0xf]
  %v1944 = vld [vmem:[%s9 + $0x60] sm:$0xf]
  %v1945 = vld [vmem:[%s9 + $0x64] sm:$0xf]
  %v1946 = vld [vmem:[%s9 + $0x68] sm:$0xf]
  %v1947 = vld [vmem:[%s9 + $0x6c] sm:$0xf]
  %v1948 = vld [vmem:[%s9 + $0x70] sm:$0xf]
  %v1949 = vld [vmem:[%s9 + $0x74] sm:$0xf]
  %v1950 = vld [vmem:[%s9 + $0x78] sm:$0xf]
  %v1951 = vld [vmem:[%s9 + $0x7c] sm:$0xf]
  %v1952 = vld [vmem:[%s9 + $0x80] sm:$0xf]
  %v1953 = vld [vmem:[%s9 + $0x84] sm:$0xf]
  %v1954 = vld [vmem:[%s9 + $0x88] sm:$0xf]
  %v1955 = vld [vmem:[%s9 + $0x8c] sm:$0xf]
  %v1956 = vld [vmem:[%s9 + $0x90] sm:$0xf]
  %v1957 = vld [vmem:[%s9 + $0x94] sm:$0xf]
  %v1958 = vld [vmem:[%s9 + $0x98] sm:$0xf]
  %v1959 = vld [vmem:[%s9 + $0x9c] sm:$0xf]
  %v1960 = vld [vmem:[%s9 + $0xa0] sm:$0xf]
  %v1961 = vld [vmem:[%s9 + $0xa4] sm:$0xf]
  %v1962 = vld [vmem:[%s9 + $0xa8] sm:$0xf]
  %v1963 = vld [vmem:[%s9 + $0xac] sm:$0xf]
  %v1964 = vld [vmem:[%s9 + $0xb0] sm:$0xf]
  %v1965 = vld [vmem:[%s9 + $0xb4] sm:$0xf]
  %v1966 = vld [vmem:[%s9 + $0xb8] sm:$0xf]
  %v1967 = vld [vmem:[%s9 + $0xbc] sm:$0xf]
  %v1968 = vld [vmem:[%s9 + $0xc0] sm:$0xf]
  %v1969 = vld [vmem:[%s9 + $0xc4] sm:$0xf]
  %v1970 = vld [vmem:[%s9 + $0xc8] sm:$0xf]
  %v1971 = vld [vmem:[%s9 + $0xcc] sm:$0xf]
  %v1972 = vld [vmem:[%s9 + $0xd0] sm:$0xf]
  %v1973 = vld [vmem:[%s9 + $0xd4] sm:$0xf]
  %v1974 = vld [vmem:[%s9 + $0xd8] sm:$0xf]
  %v1975 = vld [vmem:[%s9 + $0xdc] sm:$0xf]
  %v1976 = vld [vmem:[%s9 + $0xe0] sm:$0xf]
  %v1977 = vld [vmem:[%s9 + $0xe4] sm:$0xf]
  %v1978 = vld [vmem:[%s9 + $0xe8] sm:$0xf]
  %v1979 = vld [vmem:[%s9 + $0xec] sm:$0xf]
  %v1980 = vld [vmem:[%s9 + $0xf0] sm:$0xf]
  %v1981 = vld [vmem:[%s9 + $0xf4] sm:$0xf]
  %v1982 = vld [vmem:[%s9 + $0xf8] sm:$0xf]
  %v1983 = vld [vmem:[%s9 + $0xfc] sm:$0xf]
  %v1984 = vld [vmem:[%s9 + $0x100] sm:$0xf]
  %v1985 = vld [vmem:[%s9 + $0x104] sm:$0xf]
  %v1986 = vld [vmem:[%s9 + $0x108] sm:$0xf]
  %v1987 = vld [vmem:[%s9 + $0x10c] sm:$0xf]
  %v1988 = vld [vmem:[%s9 + $0x110] sm:$0xf]
  %v1989 = vld [vmem:[%s9 + $0x114] sm:$0xf]
  %v1990 = vld [vmem:[%s9 + $0x118] sm:$0xf]
  %v1991 = vld [vmem:[%s9 + $0x11c] sm:$0xf]
  %v1992 = vld [vmem:[%s9 + $0x120] sm:$0xf]
  %v1993 = vld [vmem:[%s9 + $0x124] sm:$0xf]
  %v1994 = vld [vmem:[%s9 + $0x128] sm:$0xf]
  %v1995 = vld [vmem:[%s9 + $0x12c] sm:$0xf]
  %v1996 = vld [vmem:[%s9 + $0x130] sm:$0xf]
  %v1997 = vld [vmem:[%s9 + $0x134] sm:$0xf]
  %v1998 = vld [vmem:[%s9 + $0x138] sm:$0xf]
  %v1999 = vld [vmem:[%s9 + $0x13c] sm:$0xf]
  %v2000 = vld [vmem:[%s9 + $0x140] sm:$0xf]
  %v2001 = vld [vmem:[%s9 + $0x144] sm:$0xf]
  %v2002 = vld [vmem:[%s9 + $0x148] sm:$0xf]
  %v2003 = vld [vmem:[%s9 + $0x14c] sm:$0xf]
  %v2004 = vld [vmem:[%s9 + $0x150] sm:$0xf]
  %v2005 = vld [vmem:[%s9 + $0x154] sm:$0xf]
  %v2006 = vld [vmem:[%s9 + $0x158] sm:$0xf]
  %v2007 = vld [vmem:[%s9 + $0x15c] sm:$0xf]
  %v2008 = vld [vmem:[%s9 + $0x160] sm:$0xf]
  %v2009 = vld [vmem:[%s9 + $0x164] sm:$0xf]
  %v2010 = vld [vmem:[%s9 + $0x168] sm:$0xf]
  %v2011 = vld [vmem:[%s9 + $0x16c] sm:$0xf]
  %v2012 = vld [vmem:[%s9 + $0x170] sm:$0xf]
  %v2013 = vld [vmem:[%s9 + $0x174] sm:$0xf]
  %v2014 = vld [vmem:[%s9 + $0x178] sm:$0xf]
  %v2015 = vld [vmem:[%s9 + $0x17c] sm:$0xf]
  %v2016 = vld [vmem:[%s9 + $0x180] sm:$0xf]
  %v2017 = vld [vmem:[%s9 + $0x184] sm:$0xf]
  %v2018 = vld [vmem:[%s9 + $0x188] sm:$0xf]
  %v2019 = vld [vmem:[%s9 + $0x18c] sm:$0xf]
  %v2020 = vld [vmem:[%s9 + $0x190] sm:$0xf]
  %v2021 = vld [vmem:[%s9 + $0x194] sm:$0xf]
  %v2022 = vld [vmem:[%s9 + $0x198] sm:$0xf]
  %v2023 = vld [vmem:[%s9 + $0x19c] sm:$0xf]
  %v2024 = vld [vmem:[%s9 + $0x1a0] sm:$0xf]
  %v2025 = vld [vmem:[%s9 + $0x1a4] sm:$0xf]
  %v2026 = vld [vmem:[%s9 + $0x1a8] sm:$0xf]
  %v2027 = vld [vmem:[%s9 + $0x1ac] sm:$0xf]
  %v2028 = vld [vmem:[%s9 + $0x1b0] sm:$0xf]
  %v2029 = vld [vmem:[%s9 + $0x1b4] sm:$0xf]
  %v2030 = vld [vmem:[%s9 + $0x1b8] sm:$0xf]
  %v2031 = vld [vmem:[%s9 + $0x1bc] sm:$0xf]
  %v2032 = vld [vmem:[%s9 + $0x1c0] sm:$0xf]
  %v2033 = vld [vmem:[%s9 + $0x1c4] sm:$0xf]
  %v2034 = vld [vmem:[%s9 + $0x1c8] sm:$0xf]
  %v2035 = vld [vmem:[%s9 + $0x1cc] sm:$0xf]
  %v2036 = vld [vmem:[%s9 + $0x1d0] sm:$0xf]
  %v2037 = vld [vmem:[%s9 + $0x1d4] sm:$0xf]
  %v2038 = vld [vmem:[%s9 + $0x1d8] sm:$0xf]
  %v2039 = vld [vmem:[%s9 + $0x1dc] sm:$0xf]
  %v2040 = vld [vmem:[%s9 + $0x1e0] sm:$0xf]
  %v2041 = vld [vmem:[%s9 + $0x1e4] sm:$0xf]
  %v2042 = vld [vmem:[%s9 + $0x1e8] sm:$0xf]
  %v2043 = vld [vmem:[%s9 + $0x1ec] sm:$0xf]
  %v2044 = vld [vmem:[%s9 + $0x1f0] sm:$0xf]
  %v2045 = vld [vmem:[%s9 + $0x1f4] sm:$0xf]
  %v2046 = vld [vmem:[%s9 + $0x1f8] sm:$0xf]
  %v2047 = vld [vmem:[%s9 + $0x1fc] sm:$0xf]
  %v2048 = vld [vmem:[%s10] sm:$0x1]
  %v2050 = vlaneseq
  %v2051 = vshrl.u32 %v2050, 7
  %v2052 = vsub.s32 0, %v2051
  %v2053 = vrot.slane %v2048, %v2052
  %v2183 = vunpack.c.l.b16 %v1920
  %v2184 = vunpack.c.l.b16 %v1921
  %v2185 = vunpack.c.l.b16 %v1922
  %v2186 = vunpack.c.l.b16 %v1923
  %v2187 = vunpack.c.l.b16 %v1924
  %v2188 = vunpack.c.l.b16 %v1925
  %v2189 = vunpack.c.l.b16 %v1926
  %v2190 = vunpack.c.l.b16 %v1927
  %v2191 = vunpack.c.l.b16 %v1928
  %v2192 = vunpack.c.l.b16 %v1929
  %v2193 = vunpack.c.l.b16 %v1930
  %v2194 = vunpack.c.l.b16 %v1931
  %v2195 = vunpack.c.l.b16 %v1932
  %v2196 = vunpack.c.l.b16 %v1933
  %v2197 = vunpack.c.l.b16 %v1934
  %v2198 = vunpack.c.l.b16 %v1935
  %v2199 = vunpack.c.l.b16 %v1936
  %v2200 = vunpack.c.l.b16 %v1937
  %v2201 = vunpack.c.l.b16 %v1938
  %v2202 = vunpack.c.l.b16 %v1939
  %v2203 = vunpack.c.l.b16 %v1940
  %v2204 = vunpack.c.l.b16 %v1941
  %v2205 = vunpack.c.l.b16 %v1942
  %v2206 = vunpack.c.l.b16 %v1943
  %v2207 = vunpack.c.l.b16 %v1944
  %v2208 = vunpack.c.l.b16 %v1945
  %v2209 = vunpack.c.l.b16 %v1946
  %v2210 = vunpack.c.l.b16 %v1947
  %v2211 = vunpack.c.l.b16 %v1948
  %v2212 = vunpack.c.l.b16 %v1949
  %v2213 = vunpack.c.l.b16 %v1950
  %v2214 = vunpack.c.l.b16 %v1951
  %v2215 = vunpack.c.l.b16 %v1952
  %v2216 = vunpack.c.l.b16 %v1953
  %v2217 = vunpack.c.l.b16 %v1954
  %v2218 = vunpack.c.l.b16 %v1955
  %v2219 = vunpack.c.l.b16 %v1956
  %v2220 = vunpack.c.l.b16 %v1957
  %v2221 = vunpack.c.l.b16 %v1958
  %v2222 = vunpack.c.l.b16 %v1959
  %v2223 = vunpack.c.l.b16 %v1960
  %v2224 = vunpack.c.l.b16 %v1961
  %v2225 = vunpack.c.l.b16 %v1962
  %v2226 = vunpack.c.l.b16 %v1963
  %v2227 = vunpack.c.l.b16 %v1964
  %v2228 = vunpack.c.l.b16 %v1965
  %v2229 = vunpack.c.l.b16 %v1966
  %v2230 = vunpack.c.l.b16 %v1967
  %v2231 = vunpack.c.l.b16 %v1968
  %v2232 = vunpack.c.l.b16 %v1969
  %v2233 = vunpack.c.l.b16 %v1970
  %v2234 = vunpack.c.l.b16 %v1971
  %v2235 = vunpack.c.l.b16 %v1972
  %v2236 = vunpack.c.l.b16 %v1973
  %v2237 = vunpack.c.l.b16 %v1974
  %v2238 = vunpack.c.l.b16 %v1975
  %v2239 = vunpack.c.l.b16 %v1976
  %v2240 = vunpack.c.l.b16 %v1977
  %v2241 = vunpack.c.l.b16 %v1978
  %v2242 = vunpack.c.l.b16 %v1979
  %v2243 = vunpack.c.l.b16 %v1980
  %v2244 = vunpack.c.l.b16 %v1981
  %v2245 = vunpack.c.l.b16 %v1982
  %v2246 = vunpack.c.l.b16 %v1983
  %v2247 = vunpack.c.l.b16 %v1984
  %v2248 = vunpack.c.l.b16 %v1985
  %v2249 = vunpack.c.l.b16 %v1986
  %v2250 = vunpack.c.l.b16 %v1987
  %v2251 = vunpack.c.l.b16 %v1988
  %v2252 = vunpack.c.l.b16 %v1989
  %v2253 = vunpack.c.l.b16 %v1990
  %v2254 = vunpack.c.l.b16 %v1991
  %v2255 = vunpack.c.l.b16 %v1992
  %v2256 = vunpack.c.l.b16 %v1993
  %v2257 = vunpack.c.l.b16 %v1994
  %v2258 = vunpack.c.l.b16 %v1995
  %v2259 = vunpack.c.l.b16 %v1996
  %v2260 = vunpack.c.l.b16 %v1997
  %v2261 = vunpack.c.l.b16 %v1998
  %v2262 = vunpack.c.l.b16 %v1999
  %v2263 = vunpack.c.l.b16 %v2000
  %v2264 = vunpack.c.l.b16 %v2001
  %v2265 = vunpack.c.l.b16 %v2002
  %v2266 = vunpack.c.l.b16 %v2003
  %v2267 = vunpack.c.l.b16 %v2004
  %v2268 = vunpack.c.l.b16 %v2005
  %v2269 = vunpack.c.l.b16 %v2006
  %v2270 = vunpack.c.l.b16 %v2007
  %v2271 = vunpack.c.l.b16 %v2008
  %v2272 = vunpack.c.l.b16 %v2009
  %v2273 = vunpack.c.l.b16 %v2010
  %v2274 = vunpack.c.l.b16 %v2011
  %v2275 = vunpack.c.l.b16 %v2012
  %v2276 = vunpack.c.l.b16 %v2013
  %v2277 = vunpack.c.l.b16 %v2014
  %v2278 = vunpack.c.l.b16 %v2015
  %v2279 = vunpack.c.l.b16 %v2016
  %v2280 = vunpack.c.l.b16 %v2017
  %v2281 = vunpack.c.l.b16 %v2018
  %v2282 = vunpack.c.l.b16 %v2019
  %v2283 = vunpack.c.l.b16 %v2020
  %v2284 = vunpack.c.l.b16 %v2021
  %v2285 = vunpack.c.l.b16 %v2022
  %v2286 = vunpack.c.l.b16 %v2023
  %v2287 = vunpack.c.l.b16 %v2024
  %v2288 = vunpack.c.l.b16 %v2025
  %v2289 = vunpack.c.l.b16 %v2026
  %v2290 = vunpack.c.l.b16 %v2027
  %v2291 = vunpack.c.l.b16 %v2028
  %v2292 = vunpack.c.l.b16 %v2029
  %v2293 = vunpack.c.l.b16 %v2030
  %v2294 = vunpack.c.l.b16 %v2031
  %v2295 = vunpack.c.l.b16 %v2032
  %v2296 = vunpack.c.l.b16 %v2033
  %v2297 = vunpack.c.l.b16 %v2034
  %v2298 = vunpack.c.l.b16 %v2035
  %v2299 = vunpack.c.l.b16 %v2036
  %v2300 = vunpack.c.l.b16 %v2037
  %v2301 = vunpack.c.l.b16 %v2038
  %v2302 = vunpack.c.l.b16 %v2039
  %v2303 = vunpack.c.l.b16 %v2040
  %v2304 = vunpack.c.l.b16 %v2041
  %v2305 = vunpack.c.l.b16 %v2042
  %v2306 = vunpack.c.l.b16 %v2043
  %v2307 = vunpack.c.l.b16 %v2044
  %v2308 = vunpack.c.l.b16 %v2045
  %v2309 = vunpack.c.l.b16 %v2046
  %v2310 = vunpack.c.l.b16 %v2047
  %v2311 = vpack.c.b16 %v2184, %v2183
  %v2312 = vpack.c.b16 %v2186, %v2185
  %v2313 = vpack.c.b16 %v2188, %v2187
  %v2314 = vpack.c.b16 %v2190, %v2189
  %v2315 = vpack.c.b16 %v2192, %v2191
  %v2316 = vpack.c.b16 %v2194, %v2193
  %v2317 = vpack.c.b16 %v2196, %v2195
  %v2318 = vpack.c.b16 %v2198, %v2197
  %v2319 = vpack.c.b16 %v2200, %v2199
  %v2320 = vpack.c.b16 %v2202, %v2201
  %v2321 = vpack.c.b16 %v2204, %v2203
  %v2322 = vpack.c.b16 %v2206, %v2205
  %v2323 = vpack.c.b16 %v2208, %v2207
  %v2324 = vpack.c.b16 %v2210, %v2209
  %v2325 = vpack.c.b16 %v2212, %v2211
  %v2326 = vpack.c.b16 %v2214, %v2213
  %v2327 = vpack.c.b16 %v2216, %v2215
  %v2328 = vpack.c.b16 %v2218, %v2217
  %v2329 = vpack.c.b16 %v2220, %v2219
  %v2330 = vpack.c.b16 %v2222, %v2221
  %v2331 = vpack.c.b16 %v2224, %v2223
  %v2332 = vpack.c.b16 %v2226, %v2225
  %v2333 = vpack.c.b16 %v2228, %v2227
  %v2334 = vpack.c.b16 %v2230, %v2229
  %v2335 = vpack.c.b16 %v2232, %v2231
  %v2336 = vpack.c.b16 %v2234, %v2233
  %v2337 = vpack.c.b16 %v2236, %v2235
  %v2338 = vpack.c.b16 %v2238, %v2237
  %v2339 = vpack.c.b16 %v2240, %v2239
  %v2340 = vpack.c.b16 %v2242, %v2241
  %v2341 = vpack.c.b16 %v2244, %v2243
  %v2342 = vpack.c.b16 %v2246, %v2245
  %v2343 = vpack.c.b16 %v2248, %v2247
  %v2344 = vpack.c.b16 %v2250, %v2249
  %v2345 = vpack.c.b16 %v2252, %v2251
  %v2346 = vpack.c.b16 %v2254, %v2253
  %v2347 = vpack.c.b16 %v2256, %v2255
  %v2348 = vpack.c.b16 %v2258, %v2257
  %v2349 = vpack.c.b16 %v2260, %v2259
  %v2350 = vpack.c.b16 %v2262, %v2261
  %v2351 = vpack.c.b16 %v2264, %v2263
  %v2352 = vpack.c.b16 %v2266, %v2265
  %v2353 = vpack.c.b16 %v2268, %v2267
  %v2354 = vpack.c.b16 %v2270, %v2269
  %v2355 = vpack.c.b16 %v2272, %v2271
  %v2356 = vpack.c.b16 %v2274, %v2273
  %v2357 = vpack.c.b16 %v2276, %v2275
  %v2358 = vpack.c.b16 %v2278, %v2277
  %v2359 = vpack.c.b16 %v2280, %v2279
  %v2360 = vpack.c.b16 %v2282, %v2281
  %v2361 = vpack.c.b16 %v2284, %v2283
  %v2362 = vpack.c.b16 %v2286, %v2285
  %v2363 = vpack.c.b16 %v2288, %v2287
  %v2364 = vpack.c.b16 %v2290, %v2289
  %v2365 = vpack.c.b16 %v2292, %v2291
  %v2366 = vpack.c.b16 %v2294, %v2293
  %v2367 = vpack.c.b16 %v2296, %v2295
  %v2368 = vpack.c.b16 %v2298, %v2297
  %v2369 = vpack.c.b16 %v2300, %v2299
  %v2370 = vpack.c.b16 %v2302, %v2301
  %v2371 = vpack.c.b16 %v2304, %v2303
  %v2372 = vpack.c.b16 %v2306, %v2305
  %v2373 = vpack.c.b16 %v2308, %v2307
  %v2374 = vpack.c.b16 %v2310, %v2309
  %2439 = vmatprep.subr.bf16.mxu0 0
  %2440 = vmatpush1.bf16.msra.mxu0 %v2311
  %2441 = vmatprep.subr.bf16.mxu0 0
  %2442 = vmatpush1.bf16.msra.mxu0 %v2312
  %2443 = vmatprep.subr.bf16.mxu0 0
  %2444 = vmatpush1.bf16.msra.mxu0 %v2313
  %2445 = vmatprep.subr.bf16.mxu0 0
  %2446 = vmatpush1.bf16.msra.mxu0 %v2314
  %2447 = vmatprep.subr.bf16.mxu0 0
  %2448 = vmatpush1.bf16.msra.mxu0 %v2315
  %2449 = vmatprep.subr.bf16.mxu0 0
  %2450 = vmatpush1.bf16.msra.mxu0 %v2316
  %2451 = vmatprep.subr.bf16.mxu0 0
  %2452 = vmatpush1.bf16.msra.mxu0 %v2317
  %2453 = vmatprep.subr.bf16.mxu0 0
  %2454 = vmatpush1.bf16.msra.mxu0 %v2318
  %2455 = vmatprep.subr.bf16.mxu0 0
  %2456 = vmatpush1.bf16.msra.mxu0 %v2319
  %2457 = vmatprep.subr.bf16.mxu0 0
  %2458 = vmatpush1.bf16.msra.mxu0 %v2320
  %2459 = vmatprep.subr.bf16.mxu0 0
  %2460 = vmatpush1.bf16.msra.mxu0 %v2321
  %2461 = vmatprep.subr.bf16.mxu0 0
  %2462 = vmatpush1.bf16.msra.mxu0 %v2322
  %2463 = vmatprep.subr.bf16.mxu0 0
  %2464 = vmatpush1.bf16.msra.mxu0 %v2323
  %2465 = vmatprep.subr.bf16.mxu0 0
  %2466 = vmatpush1.bf16.msra.mxu0 %v2324
  %2467 = vmatprep.subr.bf16.mxu0 0
  %2468 = vmatpush1.bf16.msra.mxu0 %v2325
  %2469 = vmatprep.subr.bf16.mxu0 0
  %2470 = vmatpush1.bf16.msra.mxu0 %v2326
  %2471 = vmatprep.mubr.bf16.mxu0 %v1913
  %2472 = vmatmul.mubr.bf16.gmra.mrb[0].mxu0 %v1912
  %v2473 = vpop.f32.mrb[0].mxu0
  %v2474 = vadd.f32 %v2053, %v2473
  %v2475 = vpop.f32.mrb[0].mxu0
  %v2476 = vpop.f32.mrb[0].mxu0
  %v2477 = vpop.f32.mrb[0].mxu0
  %2478 = vdwg.mxu0
  %2479 = vmatprep.subr.bf16.mxu0 0
  %2480 = vmatpush1.bf16.msra.mxu0 %v2327
  %2481 = vmatprep.subr.bf16.mxu0 0
  %2482 = vmatpush1.bf16.msra.mxu0 %v2328
  %2483 = vmatprep.subr.bf16.mxu0 0
  %2484 = vmatpush1.bf16.msra.mxu0 %v2329
  %2485 = vmatprep.subr.bf16.mxu0 0
  %2486 = vmatpush1.bf16.msra.mxu0 %v2330
  %2487 = vmatprep.subr.bf16.mxu0 0
  %2488 = vmatpush1.bf16.msra.mxu0 %v2331
  %2489 = vmatprep.subr.bf16.mxu0 0
  %2490 = vmatpush1.bf16.msra.mxu0 %v2332
  %2491 = vmatprep.subr.bf16.mxu0 0
  %2492 = vmatpush1.bf16.msra.mxu0 %v2333
  %2493 = vmatprep.subr.bf16.mxu0 0
  %2494 = vmatpush1.bf16.msra.mxu0 %v2334
  %2495 = vmatprep.subr.bf16.mxu0 0
  %2496 = vmatpush1.bf16.msra.mxu0 %v2335
  %2497 = vmatprep.subr.bf16.mxu0 0
  %2498 = vmatpush1.bf16.msra.mxu0 %v2336
  %2499 = vmatprep.subr.bf16.mxu0 0
  %2500 = vmatpush1.bf16.msra.mxu0 %v2337
  %2501 = vmatprep.subr.bf16.mxu0 0
  %2502 = vmatpush1.bf16.msra.mxu0 %v2338
  %2503 = vmatprep.subr.bf16.mxu0 0
  %2504 = vmatpush1.bf16.msra.mxu0 %v2339
  %2505 = vmatprep.subr.bf16.mxu0 0
  %2506 = vmatpush1.bf16.msra.mxu0 %v2340
  %2507 = vmatprep.subr.bf16.mxu0 0
  %2508 = vmatpush1.bf16.msra.mxu0 %v2341
  %2509 = vmatprep.subr.bf16.mxu0 0
  %2510 = vmatpush1.bf16.msra.mxu0 %v2342
  %2511 = vmatprep.mubr.bf16.mxu0 %v1915
  %2512 = vmatmul.mubr.bf16.gmra.mrb[0].mxu0 %v1914
  %v2513 = vpop.f32.mrb[0].mxu0
  %v2514 = vadd.f32 %v2474, %v2513
  %v2515 = vpop.f32.mrb[0].mxu0
  %v2516 = vpop.f32.mrb[0].mxu0
  %v2517 = vpop.f32.mrb[0].mxu0
  %2518 = vdwg.mxu0
  %2519 = vmatprep.subr.bf16.mxu0 0
  %2520 = vmatpush1.bf16.msra.mxu0 %v2343
  %2521 = vmatprep.subr.bf16.mxu0 0
  %2522 = vmatpush1.bf16.msra.mxu0 %v2344
  %2523 = vmatprep.subr.bf16.mxu0 0
  %2524 = vmatpush1.bf16.msra.mxu0 %v2345
  %2525 = vmatprep.subr.bf16.mxu0 0
  %2526 = vmatpush1.bf16.msra.mxu0 %v2346
  %2527 = vmatprep.subr.bf16.mxu0 0
  %2528 = vmatpush1.bf16.msra.mxu0 %v2347
  %2529 = vmatprep.subr.bf16.mxu0 0
  %2530 = vmatpush1.bf16.msra.mxu0 %v2348
  %2531 = vmatprep.subr.bf16.mxu0 0
  %2532 = vmatpush1.bf16.msra.mxu0 %v2349
  %2533 = vmatprep.subr.bf16.mxu0 0
  %2534 = vmatpush1.bf16.msra.mxu0 %v2350
  %2535 = vmatprep.subr.bf16.mxu0 0
  %2536 = vmatpush1.bf16.msra.mxu0 %v2351
  %2537 = vmatprep.subr.bf16.mxu0 0
  %2538 = vmatpush1.bf16.msra.mxu0 %v2352
  %2539 = vmatprep.subr.bf16.mxu0 0
  %2540 = vmatpush1.bf16.msra.mxu0 %v2353
  %2541 = vmatprep.subr.bf16.mxu0 0
  %2542 = vmatpush1.bf16.msra.mxu0 %v2354
  %2543 = vmatprep.subr.bf16.mxu0 0
  %2544 = vmatpush1.bf16.msra.mxu0 %v2355
  %2545 = vmatprep.subr.bf16.mxu0 0
  %2546 = vmatpush1.bf16.msra.mxu0 %v2356
  %2547 = vmatprep.subr.bf16.mxu0 0
  %2548 = vmatpush1.bf16.msra.mxu0 %v2357
  %2549 = vmatprep.subr.bf16.mxu0 0
  %2550 = vmatpush1.bf16.msra.mxu0 %v2358
  %2551 = vmatprep.mubr.bf16.mxu0 %v1917
  %2552 = vmatmul.mubr.bf16.gmra.mrb[0].mxu0 %v1916
  %v2553 = vpop.f32.mrb[0].mxu0
  %v2554 = vadd.f32 %v2514, %v2553
  %v2555 = vpop.f32.mrb[0].mxu0
  %v2556 = vpop.f32.mrb[0].mxu0
  %v2557 = vpop.f32.mrb[0].mxu0
  %2558 = vdwg.mxu0
  %2559 = vmatprep.subr.bf16.mxu0 0
  %2560 = vmatpush1.bf16.msra.mxu0 %v2359
  %2561 = vmatprep.subr.bf16.mxu0 0
  %2562 = vmatpush1.bf16.msra.mxu0 %v2360
  %2563 = vmatprep.subr.bf16.mxu0 0
  %2564 = vmatpush1.bf16.msra.mxu0 %v2361
  %2565 = vmatprep.subr.bf16.mxu0 0
  %2566 = vmatpush1.bf16.msra.mxu0 %v2362
  %2567 = vmatprep.subr.bf16.mxu0 0
  %2568 = vmatpush1.bf16.msra.mxu0 %v2363
  %2569 = vmatprep.subr.bf16.mxu0 0
  %2570 = vmatpush1.bf16.msra.mxu0 %v2364
  %2571 = vmatprep.subr.bf16.mxu0 0
  %2572 = vmatpush1.bf16.msra.mxu0 %v2365
  %2573 = vmatprep.subr.bf16.mxu0 0
  %2574 = vmatpush1.bf16.msra.mxu0 %v2366
  %2575 = vmatprep.subr.bf16.mxu0 0
  %2576 = vmatpush1.bf16.msra.mxu0 %v2367
  %2577 = vmatprep.subr.bf16.mxu0 0
  %2578 = vmatpush1.bf16.msra.mxu0 %v2368
  %2579 = vmatprep.subr.bf16.mxu0 0
  %2580 = vmatpush1.bf16.msra.mxu0 %v2369
  %2581 = vmatprep.subr.bf16.mxu0 0
  %2582 = vmatpush1.bf16.msra.mxu0 %v2370
  %2583 = vmatprep.subr.bf16.mxu0 0
  %2584 = vmatpush1.bf16.msra.mxu0 %v2371
  %2585 = vmatprep.subr.bf16.mxu0 0
  %2586 = vmatpush1.bf16.msra.mxu0 %v2372
  %2587 = vmatprep.subr.bf16.mxu0 0
  %2588 = vmatpush1.bf16.msra.mxu0 %v2373
  %2589 = vmatprep.subr.bf16.mxu0 0
  %2590 = vmatpush1.bf16.msra.mxu0 %v2374
  %2591 = vmatprep.mubr.bf16.mxu0 %v1919
  %2592 = vmatmul.mubr.bf16.gmra.mrb[0].mxu0 %v1918
  %v2593 = vpop.f32.mrb[0].mxu0
  %v2594 = vadd.f32 %v2554, %v2593
  %v2595 = vpop.f32.mrb[0].mxu0
  %v2596 = vpop.f32.mrb[0].mxu0
  %v2597 = vpop.f32.mrb[0].mxu0
  %2598 = vdwg.mxu0
  %2599 = vst [vmem:[%s11] sm:$0x3] %v2594
  // Predicated region
  $region46: #{atari_a2c_forward.1} parent=0 // pred_check
    _
  $region47: #{atari_a2c_forward.1} parent=0 // pred_check_branch
    %2601 = sbr.rel (0) target = $region49
  $region48: #{atari_a2c_forward.1} parent=0 // pred_region
    _
  $region49: #{atari_a2c_forward.1} parent=0 // pred_fallthru
    _
  // Predicated region
  $region50: #{atari_a2c_forward.1} parent=0 // pred_check
    _
  $region51: #{atari_a2c_forward.1} parent=0 // pred_check_branch
    %2603 = sbr.rel (0) target = $region53
  $region52: #{atari_a2c_forward.1} parent=0 // pred_region
    _
  $region53: #{atari_a2c_forward.1} parent=0 // pred_fallthru
    _

</llo_original>
